<compile_context>
chip_gen: v7x
topology: tpu7x:2x2x1
jax: 0.10.0
libtpu: 0.0.40
codegen_flags: <defaults>
</compile_context>

<pallas_src>
import functools
import numpy as np
import jax
import jax.numpy as jnp
from jax.experimental import pallas as pl
from jax.experimental.pallas import tpu as pltpu


def _round_up(x, m):
    return (x + m - 1) // m * m


# ----------------------------- Pallas kernel ------------------------------ #
def attention_rnn_kernel(
    # inputs
    xgf_ref,      # [TL, TB, 4Hp] fwd gate chunk  (global times c*TL .. c*TL+TL-1)
    xgb_ref,      # [TL, TB, 4Hp] bwd gate chunk  (global times L-(c+1)*TL .. L-c*TL-1)
    lencol_ref,   # [TB, 1]   int32 lengths (sublane-oriented, recurrence masks)
    lenrow_ref,   # [1, 1, TB] int32 lengths (lane-oriented, attention mask)
    whf_ref,      # [Hp, 4Hp]  forward  W_hh^T (gate-padded)
    whb_ref,      # [Hp, 4Hp]  backward W_hh^T
    waf_ref,      # [1, Hp]    attention weight, forward half
    wab_ref,      # [1, Hp]    attention weight, backward half
    ba_ref,       # [1, 1]     attention bias
    wcf_ref,      # [Hp, Op]   classifier weight, forward half
    wcb_ref,      # [Hp, Op]   classifier weight, backward half
    bc_ref,       # [1, Op]    classifier bias
    # outputs
    logits_ref,   # [TB, Op]
    attn_ref,     # [1, L_pad, TB]  lane-dense attention weights
    # scratch (persists across the time-chunk grid axis)
    rnnf_ref,     # [L_pad, TB, Hp] forward hidden states
    rnnb_ref,     # [L_pad, TB, Hp] backward hidden states
    hf_ref, cf_ref, hb_ref, cb_ref,   # [TB, Hp] recurrence carries
):
    L_pad, TB, Hp = rnnf_ref.shape
    TL = xgf_ref.shape[0]
    c = pl.program_id(1)
    nc = pl.num_programs(1)
    len_col = lencol_ref[...]                     # [TB, 1] int32

    # ---- reset carries at the first time chunk of each batch block ----
    @pl.when(c == 0)
    def _init():
        z = jnp.zeros((TB, Hp), jnp.float32)
        hf_ref[...] = z
        cf_ref[...] = z
        hb_ref[...] = z
        cb_ref[...] = z

    def lstm_step(gates_pre, h, c_state, whh_ref):
        # W_hh read from VMEM inside the step (weight-stationary RHS).
        gates = gates_pre + jnp.dot(h, whh_ref[...],
                                    preferred_element_type=jnp.float32)
        i = jax.nn.sigmoid(gates[:, 0 * Hp:1 * Hp])
        f = jax.nn.sigmoid(gates[:, 1 * Hp:2 * Hp])
        g = jnp.tanh(gates[:, 2 * Hp:3 * Hp])
        o = jax.nn.sigmoid(gates[:, 3 * Hp:4 * Hp])
        c_new = f * c_state + i * g
        h_new = o * jnp.tanh(c_new)
        return h_new, c_new

    t0_fwd = c * TL                     # first fwd global time in this chunk
    t0_bwd = L_pad - 1 - c * TL         # first bwd global time in this chunk

    # ---- fused recurrence: both chains advance per iteration ----
    def body(s, carry):
        h_f, c_f, h_b, c_b = carry

        t_f = t0_fwd + s
        valid_f = t_f < len_col                              # [TB, 1] bool
        hn, cn = lstm_step(xgf_ref[s], h_f, c_f, whf_ref)
        h_f = jnp.where(valid_f, hn, h_f)
        c_f = jnp.where(valid_f, cn, c_f)
        rnnf_ref[t_f] = jnp.where(valid_f, hn, 0.0)

        t_b = t0_bwd - s
        valid_b = t_b < len_col
        hn, cn = lstm_step(xgb_ref[TL - 1 - s], h_b, c_b, whb_ref)
        h_b = jnp.where(valid_b, hn, h_b)
        c_b = jnp.where(valid_b, cn, c_b)
        rnnb_ref[t_b] = jnp.where(valid_b, hn, 0.0)

        return h_f, c_f, h_b, c_b

    carry0 = (hf_ref[...], cf_ref[...], hb_ref[...], cb_ref[...])
    h_f, c_f, h_b, c_b = jax.lax.fori_loop(0, TL, body, carry0)
    hf_ref[...] = h_f
    cf_ref[...] = c_f
    hb_ref[...] = h_b
    cb_ref[...] = c_b

    # ---- attention + classifier epilogue on the last chunk ----
    @pl.when(c == nc - 1)
    def _epilogue():
        rnnf = rnnf_ref[...]                                  # [L_pad, TB, Hp]
        rnnb = rnnb_ref[...]

        # scores in lane-dense [L_pad, TB] layout (time on sublanes).
        scores = (
            jnp.sum(rnnf * waf_ref[...][None], axis=-1)
            + jnp.sum(rnnb * wab_ref[...][None], axis=-1)
            + ba_ref[...]
        )                                                     # [L_pad, TB]
        len_row = lenrow_ref[0]                               # [1, TB]
        pos = jax.lax.broadcasted_iota(jnp.int32, (L_pad, TB), 0)
        scores = jnp.where(pos < len_row, scores, jnp.float32(-1e9))

        m = jnp.max(scores, axis=0, keepdims=True)            # [1, TB]
        e = jnp.exp(scores - m)
        denom = jnp.sum(e, axis=0, keepdims=True)             # [1, TB]
        # exact divide on the output path; clamp only protects padded batch
        # lanes (denom there is 0, real lanes always have denom >= 1).
        w = e / jnp.maximum(denom, jnp.float32(1e-30))        # [L_pad, TB]

        wexp = w[:, :, None]                                  # [L_pad, TB, 1]
        ctx_f = jnp.sum(rnnf * wexp, axis=0)                  # [TB, Hp]
        ctx_b = jnp.sum(rnnb * wexp, axis=0)                  # [TB, Hp]

        logits = (
            jnp.dot(ctx_f, wcf_ref[...], preferred_element_type=jnp.float32)
            + jnp.dot(ctx_b, wcb_ref[...], preferred_element_type=jnp.float32)
            + bc_ref[...]
        )                                                     # [TB, Op]

        attn_ref[0] = w
        logits_ref[...] = logits


# ------------------------------ wrapper ----------------------------------- #
def _pad_gate_cols(w, H, Hp):
    """Zero-pad each of the 4 (i,f,g,o) gate blocks along the last axis."""
    if Hp == H:
        return w
    parts = []
    for g in range(4):
        blk = w[..., g * H:(g + 1) * H]
        pad = [(0, 0)] * (blk.ndim - 1) + [(0, Hp - H)]
        parts.append(jnp.pad(blk, pad))
    return jnp.concatenate(parts, axis=-1)


def attention_rnn_forward(text, lengths, params, hidden_dim):
    """text: [B, L] int32, lengths: [B] int32. Returns (logits [B,O], attn [B,L])."""
    B, L = text.shape
    H = hidden_dim
    O = params["bc"].shape[-1]
    Hp = _round_up(H, 128)     # lane-pad hidden: full-tile gate slices, K=128 matmuls
    Op = _round_up(O, 128)     # lane-dense classifier output

    # ---- embedding lookup (nn.Dropout is identity in eval mode) ----
    embedded = jnp.take(params["emb"], text, axis=0).astype(jnp.float32)  # [B,L,E]
    E = embedded.shape[-1]

    # ---- exact zero-padding of parameters ----
    wih = jnp.concatenate([_pad_gate_cols(params["Wih_f"], H, Hp),
                           _pad_gate_cols(params["Wih_b"], H, Hp)], axis=1)  # [E, 8Hp]
    bih = jnp.concatenate([_pad_gate_cols(params["b_f"], H, Hp),
                           _pad_gate_cols(params["b_b"], H, Hp)], axis=1)    # [1, 8Hp]
    whf = jnp.pad(_pad_gate_cols(params["Whh_f"], H, Hp), ((0, Hp - H), (0, 0)))
    whb = jnp.pad(_pad_gate_cols(params["Whh_b"], H, Hp), ((0, Hp - H), (0, 0)))
    waf = jnp.pad(params["w_attn"][:H, 0], (0, Hp - H)).reshape(1, Hp)
    wab = jnp.pad(params["w_attn"][H:, 0], (0, Hp - H)).reshape(1, Hp)
    wcf = jnp.pad(params["Wc"][:H, :], ((0, Hp - H), (0, Op - O)))
    wcb = jnp.pad(params["Wc"][H:, :], ((0, Hp - H), (0, Op - O)))
    bc = jnp.pad(params["bc"], ((0, 0), (0, Op - O)))

    # ---- hoisted input projection: one XLA matmul for both directions ----
    xg = jnp.dot(embedded.reshape(B * L, E), wih,
                 precision=jax.lax.Precision.HIGHEST) + bih                  # [B*L, 8Hp]
    xg = xg.reshape(B, L, 8 * Hp).transpose(1, 0, 2)                         # [L, B, 8Hp]

    # ---- tiling: TB batch per block (>=2 blocks once B>8), TL time chunk ----
    TB = min(128, max(8, _round_up((B + 1) // 2, 8)))
    nb = (B + TB - 1) // TB
    B_pad = nb * TB
    TL = L if L <= 32 else 16
    L_pad = _round_up(L, TL)
    nc = L_pad // TL

    xg = jnp.pad(xg, ((0, L_pad - L), (0, B_pad - B), (0, 0)))

    len_pad = jnp.pad(lengths.astype(jnp.int32), (0, B_pad - B))
    len_col = len_pad.reshape(B_pad, 1)         # sublane-oriented (recurrence masks)
    len_row = len_pad.reshape(nb, 1, TB)        # lane-oriented (attention mask)

    def const_spec(shape):
        return pl.BlockSpec(shape, lambda i, c: (0,) * len(shape))

    grid_spec = pltpu.PrefetchScalarGridSpec(
        num_scalar_prefetch=0,
        grid=(nb, nc),
        in_specs=[
            # xg passed once; fwd spec reads lane-block 0 of chunk c,
            # bwd spec reads lane-block 1 of the mirrored chunk nc-1-c.
            pl.BlockSpec((TL, TB, 4 * Hp), lambda i, c: (c, i, 0)),
            pl.BlockSpec((TL, TB, 4 * Hp), lambda i, c: (nc - 1 - c, i, 1)),
            pl.BlockSpec((TB, 1), lambda i, c: (i, 0)),
            pl.BlockSpec((1, 1, TB), lambda i, c: (i, 0, 0)),
            const_spec((Hp, 4 * Hp)),           # Whh_f
            const_spec((Hp, 4 * Hp)),           # Whh_b
            const_spec((1, Hp)),                # w_attn fwd half
            const_spec((1, Hp)),                # w_attn bwd half
            const_spec((1, 1)),                 # b_attn
            const_spec((Hp, Op)),               # Wc fwd half
            const_spec((Hp, Op)),               # Wc bwd half
            const_spec((1, Op)),                # b_c
        ],
        out_specs=[
            pl.BlockSpec((TB, Op), lambda i, c: (i, 0)),          # logits
            pl.BlockSpec((1, L_pad, TB), lambda i, c: (i, 0, 0)),  # attn (lane-dense)
        ],
        scratch_shapes=[
            pltpu.VMEM((L_pad, TB, Hp), jnp.float32),   # rnnf
            pltpu.VMEM((L_pad, TB, Hp), jnp.float32),   # rnnb
            pltpu.VMEM((TB, Hp), jnp.float32),          # h_f carry
            pltpu.VMEM((TB, Hp), jnp.float32),          # c_f carry
            pltpu.VMEM((TB, Hp), jnp.float32),          # h_b carry
            pltpu.VMEM((TB, Hp), jnp.float32),          # c_b carry
        ],
    )

    # explicit scoped-VMEM budget from actual tile sizes (+50% headroom)
    f32 = 4
    vmem_bytes = (
        2 * 2 * TL * TB * 4 * Hp * f32                               # xg chunks x2, dbl-buffered
        + 2 * (2 * Hp * 4 * Hp + 2 * Hp * Op + 2 * Hp + Op + 1) * f32  # weights
        + (2 * L_pad * TB * Hp + 4 * TB * Hp) * f32                  # scratch
        + 2 * (TB * Op + L_pad * TB) * f32                           # outputs
        + 4 * 2 * TB * f32                                           # lengths
    )
    vmem_limit = int(min(max(int(vmem_bytes * 1.5), 32 * 2 ** 20), 100 * 2 ** 20))

    logits, attn_blocks = pl.pallas_call(
        attention_rnn_kernel,
        grid_spec=grid_spec,
        out_shape=(
            jax.ShapeDtypeStruct((B_pad, Op), jnp.float32),
            jax.ShapeDtypeStruct((nb, L_pad, TB), jnp.float32),
        ),
        compiler_params=pltpu.CompilerParams(
            dimension_semantics=("parallel", "arbitrary"),
            vmem_limit_bytes=vmem_limit,
        ),
    )(
        xg, xg, len_col, len_row,
        whf, whb, waf, wab, params["b_attn"], wcf, wcb, bc,
    )

    attn = attn_blocks.transpose(0, 2, 1).reshape(B_pad, L_pad)[:B, :L]
    return logits[:B, :O], attn


# --------------------------- numpy reference ------------------------------ #
def reference_forward(text, lengths, params, hidden_dim):
    P = {k: np.asarray(v, np.float32) for k, v in params.items()}
    text = np.asarray(text)
    lengths = np.asarray(lengths)
    emb = P["emb"][text]                                   # [B, L, E]
    B, L, _ = emb.shape
    H = hidden_dim

    def sigmoid(x):
        return 1.0 / (1.0 + np.exp(-x))

    logits_all, attn_all = [], []
    for b in range(B):
        n = int(lengths[b])
        out_f = np.zeros((L, H), np.float32)
        out_b = np.zeros((L, H), np.float32)

        h = np.zeros(H, np.float32); c = np.zeros(H, np.float32)
        for t in range(n):
            g = emb[b, t] @ P["Wih_f"] + h @ P["Whh_f"] + P["b_f"][0]
            i, f, gg, o = np.split(g, 4)
            c = sigmoid(f) * c + sigmoid(i) * np.tanh(gg)
            h = sigmoid(o) * np.tanh(c)
            out_f[t] = h

        h = np.zeros(H, np.float32); c = np.zeros(H, np.float32)
        for t in range(n - 1, -1, -1):
            g = emb[b, t] @ P["Wih_b"] + h @ P["Whh_b"] + P["b_b"][0]
            i, f, gg, o = np.split(g, 4)
            c = sigmoid(f) * c + sigmoid(i) * np.tanh(gg)
            h = sigmoid(o) * np.tanh(c)
            out_b[t] = h

        rnn = np.concatenate([out_f, out_b], axis=-1)      # [L, 2H]
        scores = rnn @ P["w_attn"][:, 0] + P["b_attn"][0, 0]
        scores[n:] = -1e9
        scores = scores - scores.max()
        w = np.exp(scores); w = w / w.sum()
        ctx = w @ rnn
        logit = ctx @ P["Wc"] + P["bc"][0]
        logits_all.append(logit)
        attn_all.append(w)
    return np.stack(logits_all), np.stack(attn_all)


# ------------------------------- main ------------------------------------- #
if __name__ == "__main__":
    vocab_size, embed_dim, hidden_dim, output_dim = 20, 32, 32, 4
    B, L = 2, 8

    key = jax.random.PRNGKey(0)
    ks = jax.random.split(key, 12)

    def init(k, shape, scale=0.2):
        return (scale * jax.random.normal(k, shape)).astype(jnp.float32)

    emb = init(ks[0], (vocab_size, embed_dim))
    emb = emb.at[0].set(0.0)                               # padding_idx = 0

    H = hidden_dim
    params = {
        "emb": emb,
        # forward direction (torch W_ih [4H,E] stored transposed as [E,4H])
        "Wih_f": init(ks[1], (embed_dim, 4 * H)),
        "Whh_f": init(ks[2], (H, 4 * H)),
        "b_f":   init(ks[3], (1, 4 * H)),                  # b_ih + b_hh combined
        # backward direction
        "Wih_b": init(ks[4], (embed_dim, 4 * H)),
        "Whh_b": init(ks[5], (H, 4 * H)),
        "b_b":   init(ks[6], (1, 4 * H)),
        # attention fc (Linear(2H, 1))
        "w_attn": init(ks[7], (2 * H, 1)),
        "b_attn": init(ks[8], (1, 1)),
        # classifier (Linear(2H, O))
        "Wc": init(ks[9], (2 * H, output_dim)),
        "bc": init(ks[10], (1, output_dim)),
    }

    text = jax.random.randint(ks[11], (B, L), 1, vocab_size, dtype=jnp.int32)
    lengths = jnp.array([L, 5], dtype=jnp.int32)           # max(lengths) == L
    # zero-pad tokens past the valid length (padding_idx = 0)
    pos = jnp.arange(L)[None, :]
    text = jnp.where(pos < lengths[:, None], text, 0).astype(jnp.int32)

    run = jax.jit(functools.partial(attention_rnn_forward, hidden_dim=hidden_dim))
    logits, attn = run(text, lengths, params)
    jax.block_until_ready((logits, attn))

    ref_logits, ref_attn = reference_forward(text, lengths, params, hidden_dim)
    np.testing.assert_allclose(np.asarray(logits), ref_logits, rtol=5e-3, atol=5e-3)
    np.testing.assert_allclose(np.asarray(attn), ref_attn, rtol=5e-3, atol=5e-3)

    print("KERNEL_OK")
</pallas_src>

<mosaic_0001>
module attributes {stable_mosaic.version = 11 : i64} {
  func.func @attention_rnn_kernel(%arg0: i32, %arg1: i32, %arg2: memref<8x8x512xf32, #tpu.memory_space<vmem>>, %arg3: memref<8x8x512xf32, #tpu.memory_space<vmem>>, %arg4: memref<8x1xi32, #tpu.memory_space<vmem>>, %arg5: memref<1x1x8xi32, #tpu.memory_space<vmem>>, %arg6: memref<128x512xf32, #tpu.memory_space<vmem>>, %arg7: memref<128x512xf32, #tpu.memory_space<vmem>>, %arg8: memref<1x128xf32, #tpu.memory_space<vmem>>, %arg9: memref<1x128xf32, #tpu.memory_space<vmem>>, %arg10: memref<1x1xf32, #tpu.memory_space<vmem>>, %arg11: memref<128x128xf32, #tpu.memory_space<vmem>>, %arg12: memref<128x128xf32, #tpu.memory_space<vmem>>, %arg13: memref<1x128xf32, #tpu.memory_space<vmem>>, %arg14: memref<8x128xf32, #tpu.memory_space<vmem>>, %arg15: memref<1x8x8xf32, #tpu.memory_space<vmem>>, %arg16: memref<8x8x128xf32, #tpu.memory_space<vmem>>, %arg17: memref<8x8x128xf32, #tpu.memory_space<vmem>>, %arg18: memref<8x128xf32, #tpu.memory_space<vmem>>, %arg19: memref<8x128xf32, #tpu.memory_space<vmem>>, %arg20: memref<8x128xf32, #tpu.memory_space<vmem>>, %arg21: memref<8x128xf32, #tpu.memory_space<vmem>>) attributes {dimension_semantics = [#tpu.dimension_semantics<parallel>, #tpu.dimension_semantics<arbitrary>], iteration_bounds = array<i64: 1, 1>, scalar_prefetch = 0 : i64, scratch_operands = 6 : i64, tpu.core_type = #tpu.core_type<tc>, window_params = [{transform_indices = @transform_0, window_bounds = array<i64: 8, 8, 512>}, {transform_indices = @transform_1, window_bounds = array<i64: 8, 8, 512>}, {transform_indices = @transform_2, window_bounds = array<i64: 8, 1>}, {transform_indices = @transform_3, window_bounds = array<i64: 1, 1, 8>}, {pipeline_mode = #tpu.pipeline_mode<synchronous>, transform_indices = @transform_4, window_bounds = array<i64: 128, 512>}, {pipeline_mode = #tpu.pipeline_mode<synchronous>, transform_indices = @transform_5, window_bounds = array<i64: 128, 512>}, {pipeline_mode = #tpu.pipeline_mode<synchronous>, transform_indices = @transform_6, window_bounds = array<i64: 1, 128>}, {pipeline_mode = #tpu.pipeline_mode<synchronous>, transform_indices = @transform_7, window_bounds = array<i64: 1, 128>}, {pipeline_mode = #tpu.pipeline_mode<synchronous>, transform_indices = @transform_8, window_bounds = array<i64: 1, 1>}, {pipeline_mode = #tpu.pipeline_mode<synchronous>, transform_indices = @transform_9, window_bounds = array<i64: 128, 128>}, {pipeline_mode = #tpu.pipeline_mode<synchronous>, transform_indices = @transform_10, window_bounds = array<i64: 128, 128>}, {pipeline_mode = #tpu.pipeline_mode<synchronous>, transform_indices = @transform_11, window_bounds = array<i64: 1, 128>}, {transform_indices = @transform_12, window_bounds = array<i64: 8, 128>}, {transform_indices = @transform_13, window_bounds = array<i64: 1, 8, 8>}]} {
    %c0 = arith.constant 0 : index
    %c0_0 = arith.constant 0 : index
    %0 = vector.load %arg4[%c0, %c0_0] : memref<8x1xi32, #tpu.memory_space<vmem>>, vector<8x1xi32>
    %c0_i32 = arith.constant 0 : i32
    %1 = arith.cmpi eq, %arg1, %c0_i32 : i32
    %2 = arith.extui %1 : i1 to i32
    %c0_i32_1 = arith.constant 0 : i32
    %3 = arith.cmpi ne, %2, %c0_i32_1 : i32
    scf.if %3 {
      %cst = arith.constant 0.000000e+00 : f32
      %20 = vector.broadcast %cst : f32 to vector<8x128xf32>
      %c0_24 = arith.constant 0 : index
      %c0_25 = arith.constant 0 : index
      %21 = vector.load %arg18[%c0_24, %c0_25] : memref<8x128xf32, #tpu.memory_space<vmem>>, vector<8x128xf32>
      tpu.vector_store %arg18[%c0_24, %c0_25], %20 {strides = array<i32>} : memref<8x128xf32, #tpu.memory_space<vmem>>, vector<8x128xf32>,
      %c0_26 = arith.constant 0 : index
      %c0_27 = arith.constant 0 : index
      %22 = vector.load %arg19[%c0_26, %c0_27] : memref<8x128xf32, #tpu.memory_space<vmem>>, vector<8x128xf32>
      tpu.vector_store %arg19[%c0_26, %c0_27], %20 {strides = array<i32>} : memref<8x128xf32, #tpu.memory_space<vmem>>, vector<8x128xf32>,
      %c0_28 = arith.constant 0 : index
      %c0_29 = arith.constant 0 : index
      %23 = vector.load %arg20[%c0_28, %c0_29] : memref<8x128xf32, #tpu.memory_space<vmem>>, vector<8x128xf32>
      tpu.vector_store %arg20[%c0_28, %c0_29], %20 {strides = array<i32>} : memref<8x128xf32, #tpu.memory_space<vmem>>, vector<8x128xf32>,
      %c0_30 = arith.constant 0 : index
      %c0_31 = arith.constant 0 : index
      %24 = vector.load %arg21[%c0_30, %c0_31] : memref<8x128xf32, #tpu.memory_space<vmem>>, vector<8x128xf32>
      tpu.vector_store %arg21[%c0_30, %c0_31], %20 {strides = array<i32>} : memref<8x128xf32, #tpu.memory_space<vmem>>, vector<8x128xf32>,
    } else {
    }
    %c8_i32 = arith.constant 8 : i32
    %4 = arith.muli %arg1, %c8_i32 : i32
    %c8_i32_2 = arith.constant 8 : i32
    %5 = arith.muli %arg1, %c8_i32_2 : i32
    %c7_i32 = arith.constant 7 : i32
    %6 = arith.subi %c7_i32, %5 : i32
    %c0_3 = arith.constant 0 : index
    %c0_4 = arith.constant 0 : index
    %7 = vector.load %arg18[%c0_3, %c0_4] : memref<8x128xf32, #tpu.memory_space<vmem>>, vector<8x128xf32>
    %c0_5 = arith.constant 0 : index
    %c0_6 = arith.constant 0 : index
    %8 = vector.load %arg19[%c0_5, %c0_6] : memref<8x128xf32, #tpu.memory_space<vmem>>, vector<8x128xf32>
    %c0_7 = arith.constant 0 : index
    %c0_8 = arith.constant 0 : index
    %9 = vector.load %arg20[%c0_7, %c0_8] : memref<8x128xf32, #tpu.memory_space<vmem>>, vector<8x128xf32>
    %c0_9 = arith.constant 0 : index
    %c0_10 = arith.constant 0 : index
    %10 = vector.load %arg21[%c0_9, %c0_10] : memref<8x128xf32, #tpu.memory_space<vmem>>, vector<8x128xf32>
    %c0_i32_11 = arith.constant 0 : i32
    %c8_i32_12 = arith.constant 8 : i32
    %11 = arith.addi %c0_i32_11, %c8_i32_12 : i32
    %c1_i32 = arith.constant 1 : i32
    %12:4 = scf.for %arg22 = %c0_i32_11 to %11 step %c1_i32 iter_args(%arg23 = %7, %arg24 = %8, %arg25 = %9, %arg26 = %10) -> (vector<8x128xf32>, vector<8x128xf32>, vector<8x128xf32>, vector<8x128xf32>)  : i32 {
      %20 = arith.addi %4, %arg22 : i32
      %21 = vector.broadcast %20 : i32 to vector<8x1xi32>
      %22 = arith.cmpi slt, %21, %0 : vector<8x1xi32>
      %23 = arith.index_cast %arg22 : i32 to index
      %c0_24 = arith.constant 0 : index
      %c0_25 = arith.constant 0 : index
      %24 = vector.load %arg2[%23, %c0_24, %c0_25] : memref<8x8x512xf32, #tpu.memory_space<vmem>>, vector<1x8x512xf32>
      %25 = vector.shape_cast %24 : vector<1x8x512xf32> to vector<8x512xf32>
      %c0_26 = arith.constant 0 : index
      %c0_27 = arith.constant 0 : index
      %26 = vector.load %arg6[%c0_26, %c0_27] : memref<128x512xf32, #tpu.memory_space<vmem>>, vector<128x512xf32>
      %cst = arith.constant dense<0.000000e+00> : vector<8x512xf32>
      %27 = tpu.matmul %arg23, %26, %cst {dimension_numbers = #tpu.dot_dimension_numbers<[1], [0], [0], [1], [0, 0, 1, 1], [], []>} : vector<8x128xf32>, vector<128x512xf32>, vector<8x512xf32> -> vector<8x512xf32>
      %28 = arith.addf %25, %27 : vector<8x512xf32>
      %29 = vector.extract_strided_slice %28 {offsets = [0, 0], sizes = [8, 128], strides = [1, 1]} : vector<8x512xf32> to vector<8x128xf32>
      %30 = arith.negf %29 : vector<8x128xf32>
      %31 = math.exp %30 : vector<8x128xf32>
      %cst_28 = arith.constant 1.000000e+00 : f32
      %32 = vector.broadcast %cst_28 : f32 to vector<8x128xf32>
      %33 = arith.addf %32, %31 : vector<8x128xf32>
      %34 = arith.divf %32, %33 : vector<8x128xf32>
      %35 = vector.extract_strided_slice %28 {offsets = [0, 128], sizes = [8, 128], strides = [1, 1]} : vector<8x512xf32> to vector<8x128xf32>
      %36 = arith.negf %35 : vector<8x128xf32>
      %37 = math.exp %36 : vector<8x128xf32>
      %cst_29 = arith.constant 1.000000e+00 : f32
      %38 = vector.broadcast %cst_29 : f32 to vector<8x128xf32>
      %39 = arith.addf %38, %37 : vector<8x128xf32>
      %40 = arith.divf %38, %39 : vector<8x128xf32>
      %41 = vector.extract_strided_slice %28 {offsets = [0, 256], sizes = [8, 128], strides = [1, 1]} : vector<8x512xf32> to vector<8x128xf32>
      %42 = math.tanh %41 : vector<8x128xf32>
      %43 = vector.extract_strided_slice %28 {offsets = [0, 384], sizes = [8, 128], strides = [1, 1]} : vector<8x512xf32> to vector<8x128xf32>
      %44 = arith.negf %43 : vector<8x128xf32>
      %45 = math.exp %44 : vector<8x128xf32>
      %cst_30 = arith.constant 1.000000e+00 : f32
      %46 = vector.broadcast %cst_30 : f32 to vector<8x128xf32>
      %47 = arith.addf %46, %45 : vector<8x128xf32>
      %48 = arith.divf %46, %47 : vector<8x128xf32>
      %49 = arith.mulf %40, %arg24 : vector<8x128xf32>
      %50 = arith.mulf %34, %42 : vector<8x128xf32>
      %51 = arith.addf %49, %50 : vector<8x128xf32>
      %52 = math.tanh %51 : vector<8x128xf32>
      %53 = arith.mulf %48, %52 : vector<8x128xf32>
      %54 = vector.shape_cast %22 : vector<8x1xi1> to vector<8x1xi1>
      %55 = vector.broadcast %54 : vector<8x1xi1> to vector<8x128xi1>
      %56 = arith.select %55, %53, %arg23 : vector<8x128xi1>, vector<8x128xf32>
      %57 = vector.shape_cast %22 : vector<8x1xi1> to vector<8x1xi1>
      %58 = vector.broadcast %57 : vector<8x1xi1> to vector<8x128xi1>
      %59 = arith.select %58, %51, %arg24 : vector<8x128xi1>, vector<8x128xf32>
      %cst_31 = arith.constant 0.000000e+00 : f32
      %60 = vector.shape_cast %22 : vector<8x1xi1> to vector<8x1xi1>
      %61 = vector.broadcast %60 : vector<8x1xi1> to vector<8x128xi1>
      %62 = vector.broadcast %cst_31 : f32 to vector<8x128xf32>
      %63 = arith.select %61, %53, %62 : vector<8x128xi1>, vector<8x128xf32>
      %64 = arith.index_cast %20 : i32 to index
      %c0_32 = arith.constant 0 : index
      %c0_33 = arith.constant 0 : index
      %65 = vector.load %arg16[%64, %c0_32, %c0_33] : memref<8x8x128xf32, #tpu.memory_space<vmem>>, vector<1x8x128xf32>
      %66 = vector.shape_cast %65 : vector<1x8x128xf32> to vector<8x128xf32>
      %67 = vector.shape_cast %63 : vector<8x128xf32> to vector<1x8x128xf32>
      tpu.vector_store %arg16[%64, %c0_32, %c0_33], %67 {strides = array<i32>} : memref<8x8x128xf32, #tpu.memory_space<vmem>>, vector<1x8x128xf32>,
      %68 = arith.subi %6, %arg22 : i32
      %69 = vector.broadcast %68 : i32 to vector<8x1xi32>
      %70 = arith.cmpi slt, %69, %0 : vector<8x1xi32>
      %c7_i32_34 = arith.constant 7 : i32
      %71 = arith.subi %c7_i32_34, %arg22 : i32
      %72 = arith.index_cast %71 : i32 to index
      %c0_35 = arith.constant 0 : index
      %c0_36 = arith.constant 0 : index
      %73 = vector.load %arg3[%72, %c0_35, %c0_36] : memref<8x8x512xf32, #tpu.memory_space<vmem>>, vector<1x8x512xf32>
      %74 = vector.shape_cast %73 : vector<1x8x512xf32> to vector<8x512xf32>
      %c0_37 = arith.constant 0 : index
      %c0_38 = arith.constant 0 : index
      %75 = vector.load %arg7[%c0_37, %c0_38] : memref<128x512xf32, #tpu.memory_space<vmem>>, vector<128x512xf32>
      %cst_39 = arith.constant dense<0.000000e+00> : vector<8x512xf32>
      %76 = tpu.matmul %arg25, %75, %cst_39 {dimension_numbers = #tpu.dot_dimension_numbers<[1], [0], [0], [1], [0, 0, 1, 1], [], []>} : vector<8x128xf32>, vector<128x512xf32>, vector<8x512xf32> -> vector<8x512xf32>
      %77 = arith.addf %74, %76 : vector<8x512xf32>
      %78 = vector.extract_strided_slice %77 {offsets = [0, 0], sizes = [8, 128], strides = [1, 1]} : vector<8x512xf32> to vector<8x128xf32>
      %79 = arith.negf %78 : vector<8x128xf32>
      %80 = math.exp %79 : vector<8x128xf32>
      %cst_40 = arith.constant 1.000000e+00 : f32
      %81 = vector.broadcast %cst_40 : f32 to vector<8x128xf32>
      %82 = arith.addf %81, %80 : vector<8x128xf32>
      %83 = arith.divf %81, %82 : vector<8x128xf32>
      %84 = vector.extract_strided_slice %77 {offsets = [0, 128], sizes = [8, 128], strides = [1, 1]} : vector<8x512xf32> to vector<8x128xf32>
      %85 = arith.negf %84 : vector<8x128xf32>
      %86 = math.exp %85 : vector<8x128xf32>
      %cst_41 = arith.constant 1.000000e+00 : f32
      %87 = vector.broadcast %cst_41 : f32 to vector<8x128xf32>
      %88 = arith.addf %87, %86 : vector<8x128xf32>
      %89 = arith.divf %87, %88 : vector<8x128xf32>
      %90 = vector.extract_strided_slice %77 {offsets = [0, 256], sizes = [8, 128], strides = [1, 1]} : vector<8x512xf32> to vector<8x128xf32>
      %91 = math.tanh %90 : vector<8x128xf32>
      %92 = vector.extract_strided_slice %77 {offsets = [0, 384], sizes = [8, 128], strides = [1, 1]} : vector<8x512xf32> to vector<8x128xf32>
      %93 = arith.negf %92 : vector<8x128xf32>
      %94 = math.exp %93 : vector<8x128xf32>
      %cst_42 = arith.constant 1.000000e+00 : f32
      %95 = vector.broadcast %cst_42 : f32 to vector<8x128xf32>
      %96 = arith.addf %95, %94 : vector<8x128xf32>
      %97 = arith.divf %95, %96 : vector<8x128xf32>
      %98 = arith.mulf %89, %arg26 : vector<8x128xf32>
      %99 = arith.mulf %83, %91 : vector<8x128xf32>
      %100 = arith.addf %98, %99 : vector<8x128xf32>
      %101 = math.tanh %100 : vector<8x128xf32>
      %102 = arith.mulf %97, %101 : vector<8x128xf32>
      %103 = vector.shape_cast %70 : vector<8x1xi1> to vector<8x1xi1>
      %104 = vector.broadcast %103 : vector<8x1xi1> to vector<8x128xi1>
      %105 = arith.select %104, %102, %arg25 : vector<8x128xi1>, vector<8x128xf32>
      %106 = vector.shape_cast %70 : vector<8x1xi1> to vector<8x1xi1>
      %107 = vector.broadcast %106 : vector<8x1xi1> to vector<8x128xi1>
      %108 = arith.select %107, %100, %arg26 : vector<8x128xi1>, vector<8x128xf32>
      %cst_43 = arith.constant 0.000000e+00 : f32
      %109 = vector.shape_cast %70 : vector<8x1xi1> to vector<8x1xi1>
      %110 = vector.broadcast %109 : vector<8x1xi1> to vector<8x128xi1>
      %111 = vector.broadcast %cst_43 : f32 to vector<8x128xf32>
      %112 = arith.select %110, %102, %111 : vector<8x128xi1>, vector<8x128xf32>
      %113 = arith.index_cast %68 : i32 to index
      %c0_44 = arith.constant 0 : index
      %c0_45 = arith.constant 0 : index
      %114 = vector.load %arg17[%113, %c0_44, %c0_45] : memref<8x8x128xf32, #tpu.memory_space<vmem>>, vector<1x8x128xf32>
      %115 = vector.shape_cast %114 : vector<1x8x128xf32> to vector<8x128xf32>
      %116 = vector.shape_cast %112 : vector<8x128xf32> to vector<1x8x128xf32>
      tpu.vector_store %arg17[%113, %c0_44, %c0_45], %116 {strides = array<i32>} : memref<8x8x128xf32, #tpu.memory_space<vmem>>, vector<1x8x128xf32>,
      scf.yield %56, %59, %105, %108 : vector<8x128xf32>, vector<8x128xf32>, vector<8x128xf32>, vector<8x128xf32>
    }
    %c8_i32_13 = arith.constant 8 : i32
    %c0_14 = arith.constant 0 : index
    %c0_15 = arith.constant 0 : index
    %13 = vector.load %arg18[%c0_14, %c0_15] : memref<8x128xf32, #tpu.memory_space<vmem>>, vector<8x128xf32>
    tpu.vector_store %arg18[%c0_14, %c0_15], %12#0 {strides = array<i32>} : memref<8x128xf32, #tpu.memory_space<vmem>>, vector<8x128xf32>,
    %c0_16 = arith.constant 0 : index
    %c0_17 = arith.constant 0 : index
    %14 = vector.load %arg19[%c0_16, %c0_17] : memref<8x128xf32, #tpu.memory_space<vmem>>, vector<8x128xf32>
    tpu.vector_store %arg19[%c0_16, %c0_17], %12#1 {strides = array<i32>} : memref<8x128xf32, #tpu.memory_space<vmem>>, vector<8x128xf32>,
    %c0_18 = arith.constant 0 : index
    %c0_19 = arith.constant 0 : index
    %15 = vector.load %arg20[%c0_18, %c0_19] : memref<8x128xf32, #tpu.memory_space<vmem>>, vector<8x128xf32>
    tpu.vector_store %arg20[%c0_18, %c0_19], %12#2 {strides = array<i32>} : memref<8x128xf32, #tpu.memory_space<vmem>>, vector<8x128xf32>,
    %c0_20 = arith.constant 0 : index
    %c0_21 = arith.constant 0 : index
    %16 = vector.load %arg21[%c0_20, %c0_21] : memref<8x128xf32, #tpu.memory_space<vmem>>, vector<8x128xf32>
    tpu.vector_store %arg21[%c0_20, %c0_21], %12#3 {strides = array<i32>} : memref<8x128xf32, #tpu.memory_space<vmem>>, vector<8x128xf32>,
    %c0_i32_22 = arith.constant 0 : i32
    %17 = arith.cmpi eq, %arg1, %c0_i32_22 : i32
    %18 = arith.extui %17 : i1 to i32
    %c0_i32_23 = arith.constant 0 : i32
    %19 = arith.cmpi ne, %18, %c0_i32_23 : i32
    scf.if %19 {
      %c0_24 = arith.constant 0 : index
      %c0_25 = arith.constant 0 : index
      %c0_26 = arith.constant 0 : index
      %20 = vector.load %arg16[%c0_24, %c0_25, %c0_26] : memref<8x8x128xf32, #tpu.memory_space<vmem>>, vector<8x8x128xf32>
      %c0_27 = arith.constant 0 : index
      %c0_28 = arith.constant 0 : index
      %c0_29 = arith.constant 0 : index
      %21 = vector.load %arg17[%c0_27, %c0_28, %c0_29] : memref<8x8x128xf32, #tpu.memory_space<vmem>>, vector<8x8x128xf32>
      %c0_30 = arith.constant 0 : index
      %c0_31 = arith.constant 0 : index
      %22 = vector.load %arg8[%c0_30, %c0_31] : memref<1x128xf32, #tpu.memory_space<vmem>>, vector<1x128xf32>
      %23 = vector.shape_cast %22 : vector<1x128xf32> to vector<1x1x128xf32>
      %24 = vector.broadcast %23 : vector<1x1x128xf32> to vector<8x8x128xf32>
      %25 = arith.mulf %20, %24 : vector<8x8x128xf32>
      %cst = arith.constant dense<0.000000e+00> : vector<8x8xf32>
      %26 = vector.multi_reduction <add>, %25, %cst [2] : vector<8x8x128xf32> to vector<8x8xf32>
      %c0_32 = arith.constant 0 : index
      %c0_33 = arith.constant 0 : index
      %27 = vector.load %arg9[%c0_32, %c0_33] : memref<1x128xf32, #tpu.memory_space<vmem>>, vector<1x128xf32>
      %28 = vector.shape_cast %27 : vector<1x128xf32> to vector<1x1x128xf32>
      %29 = vector.broadcast %28 : vector<1x1x128xf32> to vector<8x8x128xf32>
      %30 = arith.mulf %21, %29 : vector<8x8x128xf32>
      %cst_34 = arith.constant dense<0.000000e+00> : vector<8x8xf32>
      %31 = vector.multi_reduction <add>, %30, %cst_34 [2] : vector<8x8x128xf32> to vector<8x8xf32>
      %32 = arith.addf %26, %31 : vector<8x8xf32>
      %c0_35 = arith.constant 0 : index
      %c0_36 = arith.constant 0 : index
      %33 = vector.load %arg10[%c0_35, %c0_36] : memref<1x1xf32, #tpu.memory_space<vmem>>, vector<1x1xf32>
      %34 = vector.broadcast %33 : vector<1x1xf32> to vector<8x8xf32>
      %35 = arith.addf %32, %34 : vector<8x8xf32>
      %c0_37 = arith.constant 0 : index
      %c0_38 = arith.constant 0 : index
      %c0_39 = arith.constant 0 : index
      %36 = vector.load %arg5[%c0_37, %c0_38, %c0_39] : memref<1x1x8xi32, #tpu.memory_space<vmem>>, vector<1x1x8xi32>
      %37 = vector.shape_cast %36 : vector<1x1x8xi32> to vector<1x8xi32>
      %38 = tpu.iota {dimensions = array<i32: 0>} : vector<8x8xi32>
      %39 = vector.broadcast %37 : vector<1x8xi32> to vector<8x8xi32>
      %40 = arith.cmpi slt, %38, %39 : vector<8x8xi32>
      %cst_40 = arith.constant -1.000000e+09 : f32
      %41 = vector.broadcast %cst_40 : f32 to vector<8x8xf32>
      %42 = arith.select %40, %35, %41 : vector<8x8xi1>, vector<8x8xf32>
      %cst_41 = arith.constant dense<0xFF800000> : vector<8xf32>
      %43 = vector.multi_reduction <maximumf>, %42, %cst_41 [0] : vector<8x8xf32> to vector<8xf32>
      %44 = vector.shape_cast %43 : vector<8xf32> to vector<1x8xf32>
      %45 = vector.broadcast %44 : vector<1x8xf32> to vector<8x8xf32>
      %46 = arith.subf %42, %45 : vector<8x8xf32>
      %47 = math.exp %46 : vector<8x8xf32>
      %cst_42 = arith.constant dense<0.000000e+00> : vector<8xf32>
      %48 = vector.multi_reduction <add>, %47, %cst_42 [0] : vector<8x8xf32> to vector<8xf32>
      %49 = vector.shape_cast %48 : vector<8xf32> to vector<1x8xf32>
      %cst_43 = arith.constant 1.000000e-30 : f32
      %50 = vector.broadcast %cst_43 : f32 to vector<1x8xf32>
      %51 = arith.maximumf %49, %50 : vector<1x8xf32>
      %52 = vector.broadcast %51 : vector<1x8xf32> to vector<8x8xf32>
      %53 = arith.divf %47, %52 : vector<8x8xf32>
      %54 = vector.shape_cast %53 : vector<8x8xf32> to vector<8x8x1xf32>
      %55 = vector.broadcast %54 : vector<8x8x1xf32> to vector<8x8x128xf32>
      %56 = arith.mulf %20, %55 : vector<8x8x128xf32>
      %cst_44 = arith.constant dense<0.000000e+00> : vector<8x128xf32>
      %57 = vector.multi_reduction <add>, %56, %cst_44 [0] : vector<8x8x128xf32> to vector<8x128xf32>
      %58 = vector.broadcast %54 : vector<8x8x1xf32> to vector<8x8x128xf32>
      %59 = arith.mulf %21, %58 : vector<8x8x128xf32>
      %cst_45 = arith.constant dense<0.000000e+00> : vector<8x128xf32>
      %60 = vector.multi_reduction <add>, %59, %cst_45 [0] : vector<8x8x128xf32> to vector<8x128xf32>
      %c0_46 = arith.constant 0 : index
      %c0_47 = arith.constant 0 : index
      %61 = vector.load %arg11[%c0_46, %c0_47] : memref<128x128xf32, #tpu.memory_space<vmem>>, vector<128x128xf32>
      %cst_48 = arith.constant dense<0.000000e+00> : vector<8x128xf32>
      %62 = tpu.matmul %57, %61, %cst_48 {dimension_numbers = #tpu.dot_dimension_numbers<[1], [0], [0], [1], [0, 0, 1, 1], [], []>} : vector<8x128xf32>, vector<128x128xf32>, vector<8x128xf32> -> vector<8x128xf32>
      %c0_49 = arith.constant 0 : index
      %c0_50 = arith.constant 0 : index
      %63 = vector.load %arg12[%c0_49, %c0_50] : memref<128x128xf32, #tpu.memory_space<vmem>>, vector<128x128xf32>
      %cst_51 = arith.constant dense<0.000000e+00> : vector<8x128xf32>
      %64 = tpu.matmul %60, %63, %cst_51 {dimension_numbers = #tpu.dot_dimension_numbers<[1], [0], [0], [1], [0, 0, 1, 1], [], []>} : vector<8x128xf32>, vector<128x128xf32>, vector<8x128xf32> -> vector<8x128xf32>
      %65 = arith.addf %62, %64 : vector<8x128xf32>
      %c0_52 = arith.constant 0 : index
      %c0_53 = arith.constant 0 : index
      %66 = vector.load %arg13[%c0_52, %c0_53] : memref<1x128xf32, #tpu.memory_space<vmem>>, vector<1x128xf32>
      %67 = vector.broadcast %66 : vector<1x128xf32> to vector<8x128xf32>
      %68 = arith.addf %65, %67 : vector<8x128xf32>
      %c0_54 = arith.constant 0 : index
      %c0_55 = arith.constant 0 : index
      %c0_56 = arith.constant 0 : index
      %69 = vector.load %arg15[%c0_54, %c0_55, %c0_56] : memref<1x8x8xf32, #tpu.memory_space<vmem>>, vector<1x8x8xf32>
      %70 = vector.shape_cast %69 : vector<1x8x8xf32> to vector<8x8xf32>
      %71 = vector.shape_cast %53 : vector<8x8xf32> to vector<1x8x8xf32>
      tpu.vector_store %arg15[%c0_54, %c0_55, %c0_56], %71 {strides = array<i32>} : memref<1x8x8xf32, #tpu.memory_space<vmem>>, vector<1x8x8xf32>,
      %c0_57 = arith.constant 0 : index
      %c0_58 = arith.constant 0 : index
      %72 = vector.load %arg14[%c0_57, %c0_58] : memref<8x128xf32, #tpu.memory_space<vmem>>, vector<8x128xf32>
      tpu.vector_store %arg14[%c0_57, %c0_58], %68 {strides = array<i32>} : memref<8x128xf32, #tpu.memory_space<vmem>>, vector<8x128xf32>,
    } else {
    }
    return
  }
  func.func @transform_0(%arg0: i32, %arg1: i32) -> (i32, i32, i32) {
    %c0_i32 = arith.constant 0 : i32
    %c0_i32_0 = arith.constant 0 : i32
    return %arg1, %arg0, %c0_i32 : i32, i32, i32
  }
  func.func @transform_1(%arg0: i32, %arg1: i32) -> (i32, i32, i32) {
    %c0_i32 = arith.constant 0 : i32
    %0 = arith.subi %c0_i32, %arg1 : i32
    %c1_i32 = arith.constant 1 : i32
    %c0_i32_0 = arith.constant 0 : i32
    return %0, %arg0, %c1_i32 : i32, i32, i32
  }
  func.func @transform_2(%arg0: i32, %arg1: i32) -> (i32, i32) {
    %c0_i32 = arith.constant 0 : i32
    %c0_i32_0 = arith.constant 0 : i32
    return %arg0, %c0_i32 : i32, i32
  }
  func.func @transform_3(%arg0: i32, %arg1: i32) -> (i32, i32, i32) {
    %c0_i32 = arith.constant 0 : i32
    %c0_i32_0 = arith.constant 0 : i32
    %c0_i32_1 = arith.constant 0 : i32
    return %arg0, %c0_i32, %c0_i32_0 : i32, i32, i32
  }
  func.func @transform_4(%arg0: i32, %arg1: i32) -> (i32, i32) {
    %c0_i32 = arith.constant 0 : i32
    %c0_i32_0 = arith.constant 0 : i32
    %c0_i32_1 = arith.constant 0 : i32
    return %c0_i32, %c0_i32_0 : i32, i32
  }
  func.func @transform_5(%arg0: i32, %arg1: i32) -> (i32, i32) {
    %c0_i32 = arith.constant 0 : i32
    %c0_i32_0 = arith.constant 0 : i32
    %c0_i32_1 = arith.constant 0 : i32
    return %c0_i32, %c0_i32_0 : i32, i32
  }
  func.func @transform_6(%arg0: i32, %arg1: i32) -> (i32, i32) {
    %c0_i32 = arith.constant 0 : i32
    %c0_i32_0 = arith.constant 0 : i32
    %c0_i32_1 = arith.constant 0 : i32
    return %c0_i32, %c0_i32_0 : i32, i32
  }
  func.func @transform_7(%arg0: i32, %arg1: i32) -> (i32, i32) {
    %c0_i32 = arith.constant 0 : i32
    %c0_i32_0 = arith.constant 0 : i32
    %c0_i32_1 = arith.constant 0 : i32
    return %c0_i32, %c0_i32_0 : i32, i32
  }
  func.func @transform_8(%arg0: i32, %arg1: i32) -> (i32, i32) {
    %c0_i32 = arith.constant 0 : i32
    %c0_i32_0 = arith.constant 0 : i32
    %c0_i32_1 = arith.constant 0 : i32
    return %c0_i32, %c0_i32_0 : i32, i32
  }
  func.func @transform_9(%arg0: i32, %arg1: i32) -> (i32, i32) {
    %c0_i32 = arith.constant 0 : i32
    %c0_i32_0 = arith.constant 0 : i32
    %c0_i32_1 = arith.constant 0 : i32
    return %c0_i32, %c0_i32_0 : i32, i32
  }
  func.func @transform_10(%arg0: i32, %arg1: i32) -> (i32, i32) {
    %c0_i32 = arith.constant 0 : i32
    %c0_i32_0 = arith.constant 0 : i32
    %c0_i32_1 = arith.constant 0 : i32
    return %c0_i32, %c0_i32_0 : i32, i32
  }
  func.func @transform_11(%arg0: i32, %arg1: i32) -> (i32, i32) {
    %c0_i32 = arith.constant 0 : i32
    %c0_i32_0 = arith.constant 0 : i32
    %c0_i32_1 = arith.constant 0 : i32
    return %c0_i32, %c0_i32_0 : i32, i32
  }
  func.func @transform_12(%arg0: i32, %arg1: i32) -> (i32, i32) {
    %c0_i32 = arith.constant 0 : i32
    %c0_i32_0 = arith.constant 0 : i32
    return %arg0, %c0_i32 : i32, i32
  }
  func.func @transform_13(%arg0: i32, %arg1: i32) -> (i32, i32, i32) {
    %c0_i32 = arith.constant 0 : i32
    %c0_i32_0 = arith.constant 0 : i32
    %c0_i32_1 = arith.constant 0 : i32
    return %arg0, %c0_i32, %c0_i32_0 : i32, i32, i32
  }
}

</mosaic_0001>

<llo_original>
// kernel: attention_rnn_forward.1
$region0: #{attention_rnn_forward.1}
  #allocation0 [shape = 'u32[]', space=smem, size = 0x4, offset = 0x4, fixed_abs, tag = 'smem constant byte address 0x4 - core index']
  #allocation1 [shape = 'u32[144,128]{1,0:T(1,128)}', space=vmem, size = 0x12000, scoped, tag = 'internal scratch']
  #allocation2 [shape = 'f32[8,8,128]{2,1,0:T(8,128)}', space=vmem, size = 0x8000, scoped, tag = 'scratch operand']
  #allocation3 [shape = 'f32[8,8,128]{2,1,0:T(8,128)}', space=vmem, size = 0x8000, scoped, tag = 'scratch operand']
  #allocation4 [shape = 'f32[8,128]{1,0:T(8,128)}', space=vmem, size = 0x1000, scoped, tag = 'scratch operand']
  #allocation5 [shape = 'f32[8,128]{1,0:T(8,128)}', space=vmem, size = 0x1000, scoped, tag = 'scratch operand']
  #allocation6 [shape = 'f32[8,128]{1,0:T(8,128)}', space=vmem, size = 0x1000, scoped, tag = 'scratch operand']
  #allocation7 [shape = 'f32[8,128]{1,0:T(8,128)}', space=vmem, size = 0x1000, scoped, tag = 'scratch operand']
  #allocation8 [shape = 'f32[1,1]{1,0:T(1,128)S(1)}', space=vmem, size = 0x200, scoped, tag = 'scoped memory for attention_rnn_forward.1']
  %s0 = inlined_call_operand.vmem [shape: f32[8,8,1024], index: 0, kind: input, shape index: {}, may-alias: {0,1}]
  %s1 = inlined_call_operand.vmem [shape: f32[8,8,1024], index: 1, kind: input, shape index: {}, may-alias: {0,1}]
  %s2 = inlined_call_operand.vmem [shape: s32[8,1], index: 2, kind: input, shape index: {}]
  %s3 = inlined_call_operand.vmem [shape: s32[1,1,8], index: 3, kind: input, shape index: {}]
  %s4 = inlined_call_operand.vmem [shape: f32[128,512], index: 4, kind: input, shape index: {}]
  %s5 = inlined_call_operand.vmem [shape: f32[128,512], index: 5, kind: input, shape index: {}]
  %s6 = inlined_call_operand.vmem [shape: f32[1,128], index: 6, kind: input, shape index: {}]
  %s7 = inlined_call_operand.vmem [shape: f32[1,128], index: 7, kind: input, shape index: {}]
  %s8 = inlined_call_operand.<no memory space> [shape: f32[1,1], index: 8, kind: input, shape index: {}]
  %s9 = inlined_call_operand.vmem [shape: f32[128,128], index: 9, kind: input, shape index: {}]
  %s10 = inlined_call_operand.vmem [shape: f32[128,128], index: 10, kind: input, shape index: {}]
  %s11 = inlined_call_operand.vmem [shape: f32[1,128], index: 11, kind: input, shape index: {}]
  %s12 = inlined_call_operand.vmem [shape: f32[8,128], index: 12, kind: output, shape index: {0}]
  %s13 = inlined_call_operand.vmem [shape: f32[1,8,8], index: 13, kind: output, shape index: {1}]
  %14 = xla_tuple %s12, %s13
  %s15 = sld [smem:[#allocation0]]
  $region127: #{attention_rnn_forward.1} parent=0
    _
  %s17 = ssub.s32 1, %s15
  %s18 = scalar_select 0, %s17, %s15
  %v19 = vstv %s8
  %20 = vst [vmem:[#allocation8] sm:$0x1] %v19
  $region1: #{attention_rnn_forward.1} parent=0
    #allocation9 [shape = 'u8[131072]{0}', space=vmem, size = 0x20000, scoped, tag = 'input window, operand 0, single buffered']
    #allocation10 [shape = 'u8[131072]{0}', space=vmem, size = 0x20000, scoped, tag = 'input window, operand 1, single buffered']
    // Predicated region
    $region2: #{attention_rnn_forward.1} parent=1 // pred_check
      _
    $region3: #{attention_rnn_forward.1} parent=1 // pred_check_branch
      %22 = sbr.rel (0) target = $region5
    $region4: #{attention_rnn_forward.1} parent=1 // pred_region
      // Predicated region
      $region6: #{attention_rnn_forward.1} parent=4 // pred_check
        _
      $region7: #{attention_rnn_forward.1} parent=4 // pred_check_branch
        %24 = sbr.rel (0) target = $region9
      $region8: #{attention_rnn_forward.1} parent=4 // pred_region
        // Predicated region
        $region10: #{attention_rnn_forward.1} parent=8 // pred_check
          _
        $region11: #{attention_rnn_forward.1} parent=8 // pred_check_branch
          %26 = sbr.rel (0) target = $region13
        $region12: #{attention_rnn_forward.1} parent=8 // pred_region
          loop: start=0, step=1, limit=1
          $region14: #{attention_rnn_forward.1} parent=12 // loop_pre_header
            _
          $region15: #{attention_rnn_forward.1} parent=12 // loop_header
            %s28 = sphi 0, %s32
            %p29 = scmp.ge.s32.totalorder %s28, 1
            %s33 = sphi %s0, %s0
            %s34 = sphi [#allocation9], [#allocation9]
          $region16: #{attention_rnn_forward.1} parent=12 // loop_header_branch
            %31 = sbr.rel (%p29) target = $region20
          $region17: #{attention_rnn_forward.1} parent=12 // loop_body
            %v35 = vld [vmem:[%s33] sm:$0xff]
            %36 = vst [vmem:[%s34] sm:$0xff] %v35
            %v37 = vld [vmem:[%s33 + $0x8] sm:$0xff]
            %38 = vst [vmem:[%s34 + $0x8] sm:$0xff] %v37
            %v39 = vld [vmem:[%s33 + $0x10] sm:$0xff]
            %40 = vst [vmem:[%s34 + $0x10] sm:$0xff] %v39
            %v41 = vld [vmem:[%s33 + $0x18] sm:$0xff]
            %42 = vst [vmem:[%s34 + $0x18] sm:$0xff] %v41
            %v43 = vld [vmem:[%s33 + $0x40] sm:$0xff]
            %44 = vst [vmem:[%s34 + $0x20] sm:$0xff] %v43
            %v45 = vld [vmem:[%s33 + $0x48] sm:$0xff]
            %46 = vst [vmem:[%s34 + $0x28] sm:$0xff] %v45
            %v47 = vld [vmem:[%s33 + $0x50] sm:$0xff]
            %48 = vst [vmem:[%s34 + $0x30] sm:$0xff] %v47
            %v49 = vld [vmem:[%s33 + $0x58] sm:$0xff]
            %50 = vst [vmem:[%s34 + $0x38] sm:$0xff] %v49
            %v51 = vld [vmem:[%s33 + $0x80] sm:$0xff]
            %52 = vst [vmem:[%s34 + $0x40] sm:$0xff] %v51
            %v53 = vld [vmem:[%s33 + $0x88] sm:$0xff]
            %54 = vst [vmem:[%s34 + $0x48] sm:$0xff] %v53
            %v55 = vld [vmem:[%s33 + $0x90] sm:$0xff]
            %56 = vst [vmem:[%s34 + $0x50] sm:$0xff] %v55
            %v57 = vld [vmem:[%s33 + $0x98] sm:$0xff]
            %58 = vst [vmem:[%s34 + $0x58] sm:$0xff] %v57
            %v59 = vld [vmem:[%s33 + $0xc0] sm:$0xff]
            %60 = vst [vmem:[%s34 + $0x60] sm:$0xff] %v59
            %v61 = vld [vmem:[%s33 + $0xc8] sm:$0xff]
            %62 = vst [vmem:[%s34 + $0x68] sm:$0xff] %v61
            %v63 = vld [vmem:[%s33 + $0xd0] sm:$0xff]
            %64 = vst [vmem:[%s34 + $0x70] sm:$0xff] %v63
            %v65 = vld [vmem:[%s33 + $0xd8] sm:$0xff]
            %66 = vst [vmem:[%s34 + $0x78] sm:$0xff] %v65
            %v67 = vld [vmem:[%s33 + $0x100] sm:$0xff]
            %68 = vst [vmem:[%s34 + $0x80] sm:$0xff] %v67
            %v69 = vld [vmem:[%s33 + $0x108] sm:$0xff]
            %70 = vst [vmem:[%s34 + $0x88] sm:$0xff] %v69
            %v71 = vld [vmem:[%s33 + $0x110] sm:$0xff]
            %72 = vst [vmem:[%s34 + $0x90] sm:$0xff] %v71
            %v73 = vld [vmem:[%s33 + $0x118] sm:$0xff]
            %74 = vst [vmem:[%s34 + $0x98] sm:$0xff] %v73
            %v75 = vld [vmem:[%s33 + $0x140] sm:$0xff]
            %76 = vst [vmem:[%s34 + $0xa0] sm:$0xff] %v75
            %v77 = vld [vmem:[%s33 + $0x148] sm:$0xff]
            %78 = vst [vmem:[%s34 + $0xa8] sm:$0xff] %v77
            %v79 = vld [vmem:[%s33 + $0x150] sm:$0xff]
            %80 = vst [vmem:[%s34 + $0xb0] sm:$0xff] %v79
            %v81 = vld [vmem:[%s33 + $0x158] sm:$0xff]
            %82 = vst [vmem:[%s34 + $0xb8] sm:$0xff] %v81
            %v83 = vld [vmem:[%s33 + $0x180] sm:$0xff]
            %84 = vst [vmem:[%s34 + $0xc0] sm:$0xff] %v83
            %v85 = vld [vmem:[%s33 + $0x188] sm:$0xff]
            %86 = vst [vmem:[%s34 + $0xc8] sm:$0xff] %v85
            %v87 = vld [vmem:[%s33 + $0x190] sm:$0xff]
            %88 = vst [vmem:[%s34 + $0xd0] sm:$0xff] %v87
            %v89 = vld [vmem:[%s33 + $0x198] sm:$0xff]
            %90 = vst [vmem:[%s34 + $0xd8] sm:$0xff] %v89
            %v91 = vld [vmem:[%s33 + $0x1c0] sm:$0xff]
            %92 = vst [vmem:[%s34 + $0xe0] sm:$0xff] %v91
            %v93 = vld [vmem:[%s33 + $0x1c8] sm:$0xff]
            %94 = vst [vmem:[%s34 + $0xe8] sm:$0xff] %v93
            %v95 = vld [vmem:[%s33 + $0x1d0] sm:$0xff]
            %96 = vst [vmem:[%s34 + $0xf0] sm:$0xff] %v95
            %v97 = vld [vmem:[%s33 + $0x1d8] sm:$0xff]
            %98 = vst [vmem:[%s34 + $0xf8] sm:$0xff] %v97
          $region18: #{attention_rnn_forward.1} parent=12 // loop_footer
            %s32 = sadd.s32 1, %s28
          $region19: #{attention_rnn_forward.1} parent=12 // loop_footer_branch
            %27 = sbr.rel target = $region15
          $region20: #{attention_rnn_forward.1} parent=12 // loop_exit
            _
        $region13: #{attention_rnn_forward.1} parent=8 // pred_fallthru
          _
        // Predicated region
        $region21: #{attention_rnn_forward.1} parent=8 // pred_check
          _
        $region22: #{attention_rnn_forward.1} parent=8 // pred_check_branch
          %100 = sbr.rel target = $region24
        $region23: #{attention_rnn_forward.1} parent=8 // pred_region
          _
        $region24: #{attention_rnn_forward.1} parent=8 // pred_fallthru
          _
      $region9: #{attention_rnn_forward.1} parent=4 // pred_fallthru
        _
      %101 = vnop
    $region5: #{attention_rnn_forward.1} parent=1 // pred_fallthru
      _
    // Predicated region
    $region25: #{attention_rnn_forward.1} parent=1 // pred_check
      _
    $region26: #{attention_rnn_forward.1} parent=1 // pred_check_branch
      %103 = sbr.rel (0) target = $region28
    $region27: #{attention_rnn_forward.1} parent=1 // pred_region
      %s104 = ssub.s32 0, 0
      %s105 = smul.u32 8, %s104
      %s106 = smul.addr %s105, 8
      %s107 = sadd.s32 4, %s106
      %s108 = smul.addr %s107, 8
      %s109 = scalar_lea.vmem %s1, %s108
      // Predicated region
      $region29: #{attention_rnn_forward.1} parent=27 // pred_check
        _
      $region30: #{attention_rnn_forward.1} parent=27 // pred_check_branch
        %111 = sbr.rel (0) target = $region32
      $region31: #{attention_rnn_forward.1} parent=27 // pred_region
        // Predicated region
        $region33: #{attention_rnn_forward.1} parent=31 // pred_check
          _
        $region34: #{attention_rnn_forward.1} parent=31 // pred_check_branch
          %113 = sbr.rel (0) target = $region36
        $region35: #{attention_rnn_forward.1} parent=31 // pred_region
          loop: start=0, step=1, limit=1
          $region37: #{attention_rnn_forward.1} parent=35 // loop_pre_header
            _
          $region38: #{attention_rnn_forward.1} parent=35 // loop_header
            %s115 = sphi 0, %s119
            %p116 = scmp.ge.s32.totalorder %s115, 1
            %s120 = sphi %s109, %s109
            %s121 = sphi [#allocation10], [#allocation10]
          $region39: #{attention_rnn_forward.1} parent=35 // loop_header_branch
            %118 = sbr.rel (%p116) target = $region43
          $region40: #{attention_rnn_forward.1} parent=35 // loop_body
            %v122 = vld [vmem:[%s120] sm:$0xff]
            %123 = vst [vmem:[%s121] sm:$0xff] %v122
            %v124 = vld [vmem:[%s120 + $0x8] sm:$0xff]
            %125 = vst [vmem:[%s121 + $0x8] sm:$0xff] %v124
            %v126 = vld [vmem:[%s120 + $0x10] sm:$0xff]
            %127 = vst [vmem:[%s121 + $0x10] sm:$0xff] %v126
            %v128 = vld [vmem:[%s120 + $0x18] sm:$0xff]
            %129 = vst [vmem:[%s121 + $0x18] sm:$0xff] %v128
            %v130 = vld [vmem:[%s120 + $0x40] sm:$0xff]
            %131 = vst [vmem:[%s121 + $0x20] sm:$0xff] %v130
            %v132 = vld [vmem:[%s120 + $0x48] sm:$0xff]
            %133 = vst [vmem:[%s121 + $0x28] sm:$0xff] %v132
            %v134 = vld [vmem:[%s120 + $0x50] sm:$0xff]
            %135 = vst [vmem:[%s121 + $0x30] sm:$0xff] %v134
            %v136 = vld [vmem:[%s120 + $0x58] sm:$0xff]
            %137 = vst [vmem:[%s121 + $0x38] sm:$0xff] %v136
            %v138 = vld [vmem:[%s120 + $0x80] sm:$0xff]
            %139 = vst [vmem:[%s121 + $0x40] sm:$0xff] %v138
            %v140 = vld [vmem:[%s120 + $0x88] sm:$0xff]
            %141 = vst [vmem:[%s121 + $0x48] sm:$0xff] %v140
            %v142 = vld [vmem:[%s120 + $0x90] sm:$0xff]
            %143 = vst [vmem:[%s121 + $0x50] sm:$0xff] %v142
            %v144 = vld [vmem:[%s120 + $0x98] sm:$0xff]
            %145 = vst [vmem:[%s121 + $0x58] sm:$0xff] %v144
            %v146 = vld [vmem:[%s120 + $0xc0] sm:$0xff]
            %147 = vst [vmem:[%s121 + $0x60] sm:$0xff] %v146
            %v148 = vld [vmem:[%s120 + $0xc8] sm:$0xff]
            %149 = vst [vmem:[%s121 + $0x68] sm:$0xff] %v148
            %v150 = vld [vmem:[%s120 + $0xd0] sm:$0xff]
            %151 = vst [vmem:[%s121 + $0x70] sm:$0xff] %v150
            %v152 = vld [vmem:[%s120 + $0xd8] sm:$0xff]
            %153 = vst [vmem:[%s121 + $0x78] sm:$0xff] %v152
            %v154 = vld [vmem:[%s120 + $0x100] sm:$0xff]
            %155 = vst [vmem:[%s121 + $0x80] sm:$0xff] %v154
            %v156 = vld [vmem:[%s120 + $0x108] sm:$0xff]
            %157 = vst [vmem:[%s121 + $0x88] sm:$0xff] %v156
            %v158 = vld [vmem:[%s120 + $0x110] sm:$0xff]
            %159 = vst [vmem:[%s121 + $0x90] sm:$0xff] %v158
            %v160 = vld [vmem:[%s120 + $0x118] sm:$0xff]
            %161 = vst [vmem:[%s121 + $0x98] sm:$0xff] %v160
            %v162 = vld [vmem:[%s120 + $0x140] sm:$0xff]
            %163 = vst [vmem:[%s121 + $0xa0] sm:$0xff] %v162
            %v164 = vld [vmem:[%s120 + $0x148] sm:$0xff]
            %165 = vst [vmem:[%s121 + $0xa8] sm:$0xff] %v164
            %v166 = vld [vmem:[%s120 + $0x150] sm:$0xff]
            %167 = vst [vmem:[%s121 + $0xb0] sm:$0xff] %v166
            %v168 = vld [vmem:[%s120 + $0x158] sm:$0xff]
            %169 = vst [vmem:[%s121 + $0xb8] sm:$0xff] %v168
            %v170 = vld [vmem:[%s120 + $0x180] sm:$0xff]
            %171 = vst [vmem:[%s121 + $0xc0] sm:$0xff] %v170
            %v172 = vld [vmem:[%s120 + $0x188] sm:$0xff]
            %173 = vst [vmem:[%s121 + $0xc8] sm:$0xff] %v172
            %v174 = vld [vmem:[%s120 + $0x190] sm:$0xff]
            %175 = vst [vmem:[%s121 + $0xd0] sm:$0xff] %v174
            %v176 = vld [vmem:[%s120 + $0x198] sm:$0xff]
            %177 = vst [vmem:[%s121 + $0xd8] sm:$0xff] %v176
            %v178 = vld [vmem:[%s120 + $0x1c0] sm:$0xff]
            %179 = vst [vmem:[%s121 + $0xe0] sm:$0xff] %v178
            %v180 = vld [vmem:[%s120 + $0x1c8] sm:$0xff]
            %181 = vst [vmem:[%s121 + $0xe8] sm:$0xff] %v180
            %v182 = vld [vmem:[%s120 + $0x1d0] sm:$0xff]
            %183 = vst [vmem:[%s121 + $0xf0] sm:$0xff] %v182
            %v184 = vld [vmem:[%s120 + $0x1d8] sm:$0xff]
            %185 = vst [vmem:[%s121 + $0xf8] sm:$0xff] %v184
          $region41: #{attention_rnn_forward.1} parent=35 // loop_footer
            %s119 = sadd.s32 1, %s115
          $region42: #{attention_rnn_forward.1} parent=35 // loop_footer_branch
            %114 = sbr.rel target = $region38
          $region43: #{attention_rnn_forward.1} parent=35 // loop_exit
            _
        $region36: #{attention_rnn_forward.1} parent=31 // pred_fallthru
          _
        // Predicated region
        $region44: #{attention_rnn_forward.1} parent=31 // pred_check
          _
        $region45: #{attention_rnn_forward.1} parent=31 // pred_check_branch
          %187 = sbr.rel target = $region47
        $region46: #{attention_rnn_forward.1} parent=31 // pred_region
          _
        $region47: #{attention_rnn_forward.1} parent=31 // pred_fallthru
          _
      $region32: #{attention_rnn_forward.1} parent=27 // pred_fallthru
        _
      %188 = vnop
    $region28: #{attention_rnn_forward.1} parent=1 // pred_fallthru
      _
    // Predicated region
    $region48: #{attention_rnn_forward.1} parent=1 // pred_check
      _
    $region49: #{attention_rnn_forward.1} parent=1 // pred_check_branch
      %190 = sbr.rel (0) target = $region51
    $region50: #{attention_rnn_forward.1} parent=1 // pred_region
      _
    $region51: #{attention_rnn_forward.1} parent=1 // pred_fallthru
      _
    // Predicated region
    $region52: #{attention_rnn_forward.1} parent=1 // pred_check
      _
    $region53: #{attention_rnn_forward.1} parent=1 // pred_check_branch
      %192 = sbr.rel (0) target = $region55
    $region54: #{attention_rnn_forward.1} parent=1 // pred_region
      _
    $region55: #{attention_rnn_forward.1} parent=1 // pred_fallthru
      _
    // Predicated region
    $region56: #{attention_rnn_forward.1} parent=1 // pred_check
      _
    $region57: #{attention_rnn_forward.1} parent=1 // pred_check_branch
      %194 = sbr.rel (0) target = $region59
    $region58: #{attention_rnn_forward.1} parent=1 // pred_region
      _
    $region59: #{attention_rnn_forward.1} parent=1 // pred_fallthru
      _
    // Predicated region
    $region60: #{attention_rnn_forward.1} parent=1 // pred_check
      _
    $region61: #{attention_rnn_forward.1} parent=1 // pred_check_branch
      %196 = sbr.rel (0) target = $region63
    $region62: #{attention_rnn_forward.1} parent=1 // pred_region
      _
    $region63: #{attention_rnn_forward.1} parent=1 // pred_fallthru
      _
    // Predicated region
    $region64: #{attention_rnn_forward.1} parent=1 // pred_check
      _
    $region65: #{attention_rnn_forward.1} parent=1 // pred_check_branch
      %198 = sbr.rel (0) target = $region67
    $region66: #{attention_rnn_forward.1} parent=1 // pred_region
      _
    $region67: #{attention_rnn_forward.1} parent=1 // pred_fallthru
      _
    // Predicated region
    $region68: #{attention_rnn_forward.1} parent=1 // pred_check
      _
    $region69: #{attention_rnn_forward.1} parent=1 // pred_check_branch
      %200 = sbr.rel (0) target = $region71
    $region70: #{attention_rnn_forward.1} parent=1 // pred_region
      _
    $region71: #{attention_rnn_forward.1} parent=1 // pred_fallthru
      _
    // Predicated region
    $region72: #{attention_rnn_forward.1} parent=1 // pred_check
      _
    $region73: #{attention_rnn_forward.1} parent=1 // pred_check_branch
      %202 = sbr.rel (0) target = $region75
    $region74: #{attention_rnn_forward.1} parent=1 // pred_region
      _
    $region75: #{attention_rnn_forward.1} parent=1 // pred_fallthru
      _
    // Predicated region
    $region76: #{attention_rnn_forward.1} parent=1 // pred_check
      _
    $region77: #{attention_rnn_forward.1} parent=1 // pred_check_branch
      %204 = sbr.rel (0) target = $region79
    $region78: #{attention_rnn_forward.1} parent=1 // pred_region
      _
    $region79: #{attention_rnn_forward.1} parent=1 // pred_fallthru
      _
    // Predicated region
    $region80: #{attention_rnn_forward.1} parent=1 // pred_check
      _
    $region81: #{attention_rnn_forward.1} parent=1 // pred_check_branch
      %206 = sbr.rel (0) target = $region83
    $region82: #{attention_rnn_forward.1} parent=1 // pred_region
      _
    $region83: #{attention_rnn_forward.1} parent=1 // pred_fallthru
      _
    // Predicated region
    $region84: #{attention_rnn_forward.1} parent=1 // pred_check
      _
    $region85: #{attention_rnn_forward.1} parent=1 // pred_check_branch
      %208 = sbr.rel (0) target = $region87
    $region86: #{attention_rnn_forward.1} parent=1 // pred_region
      _
    $region87: #{attention_rnn_forward.1} parent=1 // pred_fallthru
      _
    // Predicated region
    $region88: #{attention_rnn_forward.1} parent=1 // pred_check
      _
    $region89: #{attention_rnn_forward.1} parent=1 // pred_check_branch
      %210 = sbr.rel (0) target = $region91
    $region90: #{attention_rnn_forward.1} parent=1 // pred_region
      _
    $region91: #{attention_rnn_forward.1} parent=1 // pred_fallthru
      _
    // Predicated region
    $region92: #{attention_rnn_forward.1} parent=1 // pred_check
      _
    $region93: #{attention_rnn_forward.1} parent=1 // pred_check_branch
      %212 = sbr.rel (0) target = $region95
    $region94: #{attention_rnn_forward.1} parent=1 // pred_region
      _
    $region95: #{attention_rnn_forward.1} parent=1 // pred_fallthru
      _
    %s213 = ssub.s32 0, 0
    %s214 = smul.u32 8, %s213
    %v215 = vld [vmem:[%s2] sm:$0xff]
    %p216 = scmp.eq.s32.totalorder 0, 0
    // Predicated region
    $region96: #{attention_rnn_forward.1} parent=1 // pred_check
      %p217 = pneg %p216
    $region97: #{attention_rnn_forward.1} parent=1 // pred_check_branch
      %219 = sbr.rel (%p217) target = $region99
    $region98: #{attention_rnn_forward.1} parent=1 // pred_region
      %220 = vst [vmem:[#allocation4] sm:$0xff] 0.0
      %221 = vst [vmem:[#allocation5] sm:$0xff] 0.0
      %222 = vst [vmem:[#allocation6] sm:$0xff] 0.0
      %223 = vst [vmem:[#allocation7] sm:$0xff] 0.0
    $region99: #{attention_rnn_forward.1} parent=1 // pred_fallthru
      _
    %s224 = smul.u32 0, 8
    %s225 = ssub.s32 7, %s224
    %v226 = vld [vmem:[#allocation4] sm:$0xff]
    %v227 = vld [vmem:[#allocation5] sm:$0xff]
    %v228 = vld [vmem:[#allocation6] sm:$0xff]
    %v229 = vld [vmem:[#allocation7] sm:$0xff]
    loop: start=0, step=1, limit=8
    $region100: #{attention_rnn_forward.1} parent=1 // loop_pre_header
      _
    $region101: #{attention_rnn_forward.1} parent=1 // loop_header
      %s231 = sphi 0, %s235
      %p232 = scmp.ge.s32.totalorder %s231, 8
      %v236 = vphi %v226, %v489
      %v237 = vphi %v227, %v490
      %v238 = vphi %v228, %v745
      %v239 = vphi %v229, %v746
    $region102: #{attention_rnn_forward.1} parent=1 // loop_header_branch
      %234 = sbr.rel (%p232) target = $region106
    $region103: #{attention_rnn_forward.1} parent=1 // loop_body
      %s240 = sadd.s32 %s224, %s231
      %v241 = vstv %s240
      %vm242 = vcmp.lt.s32.totalorder %v241, %v215
      %s243 = smul.u32 %s231, 4
      %s244 = smul.addr %s243, 8
      %s245 = scalar_lea.vmem [#allocation9], %s244
      %v246 = vld [vmem:[%s245] sm:$0xff]
      %v247 = vld [vmem:[%s245 + $0x8] sm:$0xff]
      %v248 = vld [vmem:[%s245 + $0x10] sm:$0xff]
      %v249 = vld [vmem:[%s245 + $0x18] sm:$0xff]
      %v250 = vld [vmem:[%s4] sm:$0xff]
      %v251 = vld [vmem:[%s4 + $0x8] sm:$0xff]
      %v252 = vld [vmem:[%s4 + $0x10] sm:$0xff]
      %v253 = vld [vmem:[%s4 + $0x18] sm:$0xff]
      %v254 = vld [vmem:[%s4 + $0x20] sm:$0xff]
      %v255 = vld [vmem:[%s4 + $0x28] sm:$0xff]
      %v256 = vld [vmem:[%s4 + $0x30] sm:$0xff]
      %v257 = vld [vmem:[%s4 + $0x38] sm:$0xff]
      %v258 = vld [vmem:[%s4 + $0x40] sm:$0xff]
      %v259 = vld [vmem:[%s4 + $0x48] sm:$0xff]
      %v260 = vld [vmem:[%s4 + $0x50] sm:$0xff]
      %v261 = vld [vmem:[%s4 + $0x58] sm:$0xff]
      %v262 = vld [vmem:[%s4 + $0x60] sm:$0xff]
      %v263 = vld [vmem:[%s4 + $0x68] sm:$0xff]
      %v264 = vld [vmem:[%s4 + $0x70] sm:$0xff]
      %v265 = vld [vmem:[%s4 + $0x78] sm:$0xff]
      %v266 = vld [vmem:[%s4 + $0x80] sm:$0xff]
      %v267 = vld [vmem:[%s4 + $0x88] sm:$0xff]
      %v268 = vld [vmem:[%s4 + $0x90] sm:$0xff]
      %v269 = vld [vmem:[%s4 + $0x98] sm:$0xff]
      %v270 = vld [vmem:[%s4 + $0xa0] sm:$0xff]
      %v271 = vld [vmem:[%s4 + $0xa8] sm:$0xff]
      %v272 = vld [vmem:[%s4 + $0xb0] sm:$0xff]
      %v273 = vld [vmem:[%s4 + $0xb8] sm:$0xff]
      %v274 = vld [vmem:[%s4 + $0xc0] sm:$0xff]
      %v275 = vld [vmem:[%s4 + $0xc8] sm:$0xff]
      %v276 = vld [vmem:[%s4 + $0xd0] sm:$0xff]
      %v277 = vld [vmem:[%s4 + $0xd8] sm:$0xff]
      %v278 = vld [vmem:[%s4 + $0xe0] sm:$0xff]
      %v279 = vld [vmem:[%s4 + $0xe8] sm:$0xff]
      %v280 = vld [vmem:[%s4 + $0xf0] sm:$0xff]
      %v281 = vld [vmem:[%s4 + $0xf8] sm:$0xff]
      %v282 = vld [vmem:[%s4 + $0x100] sm:$0xff]
      %v283 = vld [vmem:[%s4 + $0x108] sm:$0xff]
      %v284 = vld [vmem:[%s4 + $0x110] sm:$0xff]
      %v285 = vld [vmem:[%s4 + $0x118] sm:$0xff]
      %v286 = vld [vmem:[%s4 + $0x120] sm:$0xff]
      %v287 = vld [vmem:[%s4 + $0x128] sm:$0xff]
      %v288 = vld [vmem:[%s4 + $0x130] sm:$0xff]
      %v289 = vld [vmem:[%s4 + $0x138] sm:$0xff]
      %v290 = vld [vmem:[%s4 + $0x140] sm:$0xff]
      %v291 = vld [vmem:[%s4 + $0x148] sm:$0xff]
      %v292 = vld [vmem:[%s4 + $0x150] sm:$0xff]
      %v293 = vld [vmem:[%s4 + $0x158] sm:$0xff]
      %v294 = vld [vmem:[%s4 + $0x160] sm:$0xff]
      %v295 = vld [vmem:[%s4 + $0x168] sm:$0xff]
      %v296 = vld [vmem:[%s4 + $0x170] sm:$0xff]
      %v297 = vld [vmem:[%s4 + $0x178] sm:$0xff]
      %v298 = vld [vmem:[%s4 + $0x180] sm:$0xff]
      %v299 = vld [vmem:[%s4 + $0x188] sm:$0xff]
      %v300 = vld [vmem:[%s4 + $0x190] sm:$0xff]
      %v301 = vld [vmem:[%s4 + $0x198] sm:$0xff]
      %v302 = vld [vmem:[%s4 + $0x1a0] sm:$0xff]
      %v303 = vld [vmem:[%s4 + $0x1a8] sm:$0xff]
      %v304 = vld [vmem:[%s4 + $0x1b0] sm:$0xff]
      %v305 = vld [vmem:[%s4 + $0x1b8] sm:$0xff]
      %v306 = vld [vmem:[%s4 + $0x1c0] sm:$0xff]
      %v307 = vld [vmem:[%s4 + $0x1c8] sm:$0xff]
      %v308 = vld [vmem:[%s4 + $0x1d0] sm:$0xff]
      %v309 = vld [vmem:[%s4 + $0x1d8] sm:$0xff]
      %v310 = vld [vmem:[%s4 + $0x1e0] sm:$0xff]
      %v311 = vld [vmem:[%s4 + $0x1e8] sm:$0xff]
      %v312 = vld [vmem:[%s4 + $0x1f0] sm:$0xff]
      %v313 = vld [vmem:[%s4 + $0x1f8] sm:$0xff]
      %314 = vmatprep.subr.mxu0 %v251
      %315 = vmatpush1.msra.mxu0 %v250
      %316 = vmatprep.subr.mxu0 %v255
      %317 = vmatpush1.msra.mxu0 %v254
      %318 = vmatprep.subr.mxu0 %v259
      %319 = vmatpush1.msra.mxu0 %v258
      %320 = vmatprep.subr.mxu0 %v263
      %321 = vmatpush1.msra.mxu0 %v262
      %322 = vmatprep.subr.mxu0 %v267
      %323 = vmatpush1.msra.mxu0 %v266
      %324 = vmatprep.subr.mxu0 %v271
      %325 = vmatpush1.msra.mxu0 %v270
      %326 = vmatprep.subr.mxu0 %v275
      %327 = vmatpush1.msra.mxu0 %v274
      %328 = vmatprep.subr.mxu0 %v279
      %329 = vmatpush1.msra.mxu0 %v278
      %330 = vmatprep.subr.mxu0 %v283
      %331 = vmatpush1.msra.mxu0 %v282
      %332 = vmatprep.subr.mxu0 %v287
      %333 = vmatpush1.msra.mxu0 %v286
      %334 = vmatprep.subr.mxu0 %v291
      %335 = vmatpush1.msra.mxu0 %v290
      %336 = vmatprep.subr.mxu0 %v295
      %337 = vmatpush1.msra.mxu0 %v294
      %338 = vmatprep.subr.mxu0 %v299
      %339 = vmatpush1.msra.mxu0 %v298
      %340 = vmatprep.subr.mxu0 %v303
      %341 = vmatpush1.msra.mxu0 %v302
      %342 = vmatprep.subr.mxu0 %v307
      %343 = vmatpush1.msra.mxu0 %v306
      %344 = vmatprep.subr.mxu0 %v311
      %345 = vmatpush1.msra.mxu0 %v310
      %346 = vmatprep.subr.mxu0 0.0
      %347 = vmatpush1.msra.mxu0 0.0
      %348 = vmatprep.subr.mxu0 0.0
      %349 = vmatpush1.msra.mxu0 0.0
      %350 = vmatprep.subr.mxu0 0.0
      %351 = vmatpush1.msra.mxu0 0.0
      %352 = vmatprep.subr.mxu0 0.0
      %353 = vmatpush1.msra.mxu0 0.0
      %354 = vmatprep.subr.mxu0 0.0
      %355 = vmatpush1.msra.mxu0 0.0
      %356 = vmatprep.subr.mxu0 0.0
      %357 = vmatpush1.msra.mxu0 0.0
      %358 = vmatprep.subr.mxu0 0.0
      %359 = vmatpush1.msra.mxu0 0.0
      %360 = vmatprep.subr.mxu0 0.0
      %361 = vmatpush1.msra.mxu0 0.0
      %362 = vmatprep.subr.mxu0 0.0
      %363 = vmatpush1.msra.mxu0 0.0
      %364 = vmatprep.subr.mxu0 0.0
      %365 = vmatpush1.msra.mxu0 0.0
      %366 = vmatprep.subr.mxu0 0.0
      %367 = vmatpush1.msra.mxu0 0.0
      %368 = vmatprep.subr.mxu0 0.0
      %369 = vmatpush1.msra.mxu0 0.0
      %370 = vmatprep.subr.mxu0 0.0
      %371 = vmatpush1.msra.mxu0 0.0
      %372 = vmatprep.subr.mxu0 0.0
      %373 = vmatpush1.msra.mxu0 0.0
      %374 = vmatprep.subr.mxu0 0.0
      %375 = vmatpush1.msra.mxu0 0.0
      %376 = vmatprep.subr.mxu0 0.0
      %377 = vmatpush1.msra.mxu0 0.0
      %378 = vmatprep.mubr.f32.mxu0 0.0
      %379 = vmatmul.mubr.f32.gmra.mrb[0].mxu0 %v236
      %v380 = vpop.f32.mrb[0].mxu0
      %v381 = vadd.f32 0.0, %v380
      %v382 = vpop.f32.mrb[0].mxu0
      %v383 = vadd.f32 0.0, %v382
      %384 = vdwg.mxu0
      %385 = vmatprep.subr.mxu0 %v253
      %386 = vmatpush1.msra.mxu0 %v252
      %387 = vmatprep.subr.mxu0 %v257
      %388 = vmatpush1.msra.mxu0 %v256
      %389 = vmatprep.subr.mxu0 %v261
      %390 = vmatpush1.msra.mxu0 %v260
      %391 = vmatprep.subr.mxu0 %v265
      %392 = vmatpush1.msra.mxu0 %v264
      %393 = vmatprep.subr.mxu0 %v269
      %394 = vmatpush1.msra.mxu0 %v268
      %395 = vmatprep.subr.mxu0 %v273
      %396 = vmatpush1.msra.mxu0 %v272
      %397 = vmatprep.subr.mxu0 %v277
      %398 = vmatpush1.msra.mxu0 %v276
      %399 = vmatprep.subr.mxu0 %v281
      %400 = vmatpush1.msra.mxu0 %v280
      %401 = vmatprep.subr.mxu0 %v285
      %402 = vmatpush1.msra.mxu0 %v284
      %403 = vmatprep.subr.mxu0 %v289
      %404 = vmatpush1.msra.mxu0 %v288
      %405 = vmatprep.subr.mxu0 %v293
      %406 = vmatpush1.msra.mxu0 %v292
      %407 = vmatprep.subr.mxu0 %v297
      %408 = vmatpush1.msra.mxu0 %v296
      %409 = vmatprep.subr.mxu0 %v301
      %410 = vmatpush1.msra.mxu0 %v300
      %411 = vmatprep.subr.mxu0 %v305
      %412 = vmatpush1.msra.mxu0 %v304
      %413 = vmatprep.subr.mxu0 %v309
      %414 = vmatpush1.msra.mxu0 %v308
      %415 = vmatprep.subr.mxu0 %v313
      %416 = vmatpush1.msra.mxu0 %v312
      %417 = vmatprep.subr.mxu0 0.0
      %418 = vmatpush1.msra.mxu0 0.0
      %419 = vmatprep.subr.mxu0 0.0
      %420 = vmatpush1.msra.mxu0 0.0
      %421 = vmatprep.subr.mxu0 0.0
      %422 = vmatpush1.msra.mxu0 0.0
      %423 = vmatprep.subr.mxu0 0.0
      %424 = vmatpush1.msra.mxu0 0.0
      %425 = vmatprep.subr.mxu0 0.0
      %426 = vmatpush1.msra.mxu0 0.0
      %427 = vmatprep.subr.mxu0 0.0
      %428 = vmatpush1.msra.mxu0 0.0
      %429 = vmatprep.subr.mxu0 0.0
      %430 = vmatpush1.msra.mxu0 0.0
      %431 = vmatprep.subr.mxu0 0.0
      %432 = vmatpush1.msra.mxu0 0.0
      %433 = vmatprep.subr.mxu0 0.0
      %434 = vmatpush1.msra.mxu0 0.0
      %435 = vmatprep.subr.mxu0 0.0
      %436 = vmatpush1.msra.mxu0 0.0
      %437 = vmatprep.subr.mxu0 0.0
      %438 = vmatpush1.msra.mxu0 0.0
      %439 = vmatprep.subr.mxu0 0.0
      %440 = vmatpush1.msra.mxu0 0.0
      %441 = vmatprep.subr.mxu0 0.0
      %442 = vmatpush1.msra.mxu0 0.0
      %443 = vmatprep.subr.mxu0 0.0
      %444 = vmatpush1.msra.mxu0 0.0
      %445 = vmatprep.subr.mxu0 0.0
      %446 = vmatpush1.msra.mxu0 0.0
      %447 = vmatprep.subr.mxu0 0.0
      %448 = vmatpush1.msra.mxu0 0.0
      %449 = vmatprep.mubr.f32.mxu0 0.0
      %450 = vmatmul.mubr.f32.gmra.mrb[0].mxu0 %v236
      %v451 = vpop.f32.mrb[0].mxu0
      %v452 = vadd.f32 0.0, %v451
      %v453 = vpop.f32.mrb[0].mxu0
      %v454 = vadd.f32 0.0, %v453
      %455 = vdwg.mxu0
      %v456 = vadd.f32 %v246, %v381
      %v457 = vadd.f32 %v247, %v383
      %v458 = vadd.f32 %v248, %v452
      %v459 = vadd.f32 %v249, %v454
      %v460 = vxor.u32 %v456, 2147483648
      %v461 = vmul.f32 %v460, 1.442695
      %v462 = vpow.pop %v461
      %v463 = vadd.f32 %v462, 1.0
      %v464 = vrcp.pop %v463
      %v465 = vmul.f32 1.0, %v464
      %v466 = vxor.u32 %v457, 2147483648
      %v467 = vmul.f32 %v466, 1.442695
      %v468 = vpow.pop %v467
      %v469 = vadd.f32 %v468, 1.0
      %v470 = vrcp.pop %v469
      %v471 = vmul.f32 1.0, %v470
      %v472 = vtanh.pop %v458
      %v473 = vxor.u32 %v459, 2147483648
      %v474 = vmul.f32 %v473, 1.442695
      %v475 = vpow.pop %v474
      %v476 = vadd.f32 %v475, 1.0
      %v477 = vrcp.pop %v476
      %v478 = vmul.f32 1.0, %v477
      %v479 = vmul.f32 %v471, %v237
      %v480 = vmul.f32 %v465, %v472
      %v481 = vadd.f32 %v479, %v480
      %v482 = vtanh.pop %v481
      %v483 = vmul.f32 %v478, %v482
      %v484 = vsel %vm242, 1, 0
      %485 = vset.pattern.permute.xlu0 0
      %486 = vperm.xlu0 %485, %v484
      %v487 = vpop.permute.xlu0 %486
      %vm488 = vcmp.eq.s32.totalorder %v487, 1
      %v489 = vsel %vm488, %v483, %v236
      %v490 = vsel %vm488, %v481, %v237
      %v491 = vsel %vm488, %v483, 0.0
      %s492 = smul.u32 %s240, 8
      %s493 = scalar_lea.vmem [#allocation2], %s492
      %494 = vst [vmem:[%s493] sm:$0xff] %v491
      %s495 = ssub.s32 %s225, %s231
      %v496 = vstv %s495
      %vm497 = vcmp.lt.s32.totalorder %v496, %v215
      %s498 = ssub.s32 7, %s231
      %s499 = smul.u32 %s498, 4
      %s500 = smul.addr %s499, 8
      %s501 = scalar_lea.vmem [#allocation10], %s500
      %v502 = vld [vmem:[%s501] sm:$0xff]
      %v503 = vld [vmem:[%s501 + $0x8] sm:$0xff]
      %v504 = vld [vmem:[%s501 + $0x10] sm:$0xff]
      %v505 = vld [vmem:[%s501 + $0x18] sm:$0xff]
      %v506 = vld [vmem:[%s5] sm:$0xff]
      %v507 = vld [vmem:[%s5 + $0x8] sm:$0xff]
      %v508 = vld [vmem:[%s5 + $0x10] sm:$0xff]
      %v509 = vld [vmem:[%s5 + $0x18] sm:$0xff]
      %v510 = vld [vmem:[%s5 + $0x20] sm:$0xff]
      %v511 = vld [vmem:[%s5 + $0x28] sm:$0xff]
      %v512 = vld [vmem:[%s5 + $0x30] sm:$0xff]
      %v513 = vld [vmem:[%s5 + $0x38] sm:$0xff]
      %v514 = vld [vmem:[%s5 + $0x40] sm:$0xff]
      %v515 = vld [vmem:[%s5 + $0x48] sm:$0xff]
      %v516 = vld [vmem:[%s5 + $0x50] sm:$0xff]
      %v517 = vld [vmem:[%s5 + $0x58] sm:$0xff]
      %v518 = vld [vmem:[%s5 + $0x60] sm:$0xff]
      %v519 = vld [vmem:[%s5 + $0x68] sm:$0xff]
      %v520 = vld [vmem:[%s5 + $0x70] sm:$0xff]
      %v521 = vld [vmem:[%s5 + $0x78] sm:$0xff]
      %v522 = vld [vmem:[%s5 + $0x80] sm:$0xff]
      %v523 = vld [vmem:[%s5 + $0x88] sm:$0xff]
      %v524 = vld [vmem:[%s5 + $0x90] sm:$0xff]
      %v525 = vld [vmem:[%s5 + $0x98] sm:$0xff]
      %v526 = vld [vmem:[%s5 + $0xa0] sm:$0xff]
      %v527 = vld [vmem:[%s5 + $0xa8] sm:$0xff]
      %v528 = vld [vmem:[%s5 + $0xb0] sm:$0xff]
      %v529 = vld [vmem:[%s5 + $0xb8] sm:$0xff]
      %v530 = vld [vmem:[%s5 + $0xc0] sm:$0xff]
      %v531 = vld [vmem:[%s5 + $0xc8] sm:$0xff]
      %v532 = vld [vmem:[%s5 + $0xd0] sm:$0xff]
      %v533 = vld [vmem:[%s5 + $0xd8] sm:$0xff]
      %v534 = vld [vmem:[%s5 + $0xe0] sm:$0xff]
      %v535 = vld [vmem:[%s5 + $0xe8] sm:$0xff]
      %v536 = vld [vmem:[%s5 + $0xf0] sm:$0xff]
      %v537 = vld [vmem:[%s5 + $0xf8] sm:$0xff]
      %v538 = vld [vmem:[%s5 + $0x100] sm:$0xff]
      %v539 = vld [vmem:[%s5 + $0x108] sm:$0xff]
      %v540 = vld [vmem:[%s5 + $0x110] sm:$0xff]
      %v541 = vld [vmem:[%s5 + $0x118] sm:$0xff]
      %v542 = vld [vmem:[%s5 + $0x120] sm:$0xff]
      %v543 = vld [vmem:[%s5 + $0x128] sm:$0xff]
      %v544 = vld [vmem:[%s5 + $0x130] sm:$0xff]
      %v545 = vld [vmem:[%s5 + $0x138] sm:$0xff]
      %v546 = vld [vmem:[%s5 + $0x140] sm:$0xff]
      %v547 = vld [vmem:[%s5 + $0x148] sm:$0xff]
      %v548 = vld [vmem:[%s5 + $0x150] sm:$0xff]
      %v549 = vld [vmem:[%s5 + $0x158] sm:$0xff]
      %v550 = vld [vmem:[%s5 + $0x160] sm:$0xff]
      %v551 = vld [vmem:[%s5 + $0x168] sm:$0xff]
      %v552 = vld [vmem:[%s5 + $0x170] sm:$0xff]
      %v553 = vld [vmem:[%s5 + $0x178] sm:$0xff]
      %v554 = vld [vmem:[%s5 + $0x180] sm:$0xff]
      %v555 = vld [vmem:[%s5 + $0x188] sm:$0xff]
      %v556 = vld [vmem:[%s5 + $0x190] sm:$0xff]
      %v557 = vld [vmem:[%s5 + $0x198] sm:$0xff]
      %v558 = vld [vmem:[%s5 + $0x1a0] sm:$0xff]
      %v559 = vld [vmem:[%s5 + $0x1a8] sm:$0xff]
      %v560 = vld [vmem:[%s5 + $0x1b0] sm:$0xff]
      %v561 = vld [vmem:[%s5 + $0x1b8] sm:$0xff]
      %v562 = vld [vmem:[%s5 + $0x1c0] sm:$0xff]
      %v563 = vld [vmem:[%s5 + $0x1c8] sm:$0xff]
      %v564 = vld [vmem:[%s5 + $0x1d0] sm:$0xff]
      %v565 = vld [vmem:[%s5 + $0x1d8] sm:$0xff]
      %v566 = vld [vmem:[%s5 + $0x1e0] sm:$0xff]
      %v567 = vld [vmem:[%s5 + $0x1e8] sm:$0xff]
      %v568 = vld [vmem:[%s5 + $0x1f0] sm:$0xff]
      %v569 = vld [vmem:[%s5 + $0x1f8] sm:$0xff]
      %570 = vmatprep.subr.mxu0 %v507
      %571 = vmatpush1.msra.mxu0 %v506
      %572 = vmatprep.subr.mxu0 %v511
      %573 = vmatpush1.msra.mxu0 %v510
      %574 = vmatprep.subr.mxu0 %v515
      %575 = vmatpush1.msra.mxu0 %v514
      %576 = vmatprep.subr.mxu0 %v519
      %577 = vmatpush1.msra.mxu0 %v518
      %578 = vmatprep.subr.mxu0 %v523
      %579 = vmatpush1.msra.mxu0 %v522
      %580 = vmatprep.subr.mxu0 %v527
      %581 = vmatpush1.msra.mxu0 %v526
      %582 = vmatprep.subr.mxu0 %v531
      %583 = vmatpush1.msra.mxu0 %v530
      %584 = vmatprep.subr.mxu0 %v535
      %585 = vmatpush1.msra.mxu0 %v534
      %586 = vmatprep.subr.mxu0 %v539
      %587 = vmatpush1.msra.mxu0 %v538
      %588 = vmatprep.subr.mxu0 %v543
      %589 = vmatpush1.msra.mxu0 %v542
      %590 = vmatprep.subr.mxu0 %v547
      %591 = vmatpush1.msra.mxu0 %v546
      %592 = vmatprep.subr.mxu0 %v551
      %593 = vmatpush1.msra.mxu0 %v550
      %594 = vmatprep.subr.mxu0 %v555
      %595 = vmatpush1.msra.mxu0 %v554
      %596 = vmatprep.subr.mxu0 %v559
      %597 = vmatpush1.msra.mxu0 %v558
      %598 = vmatprep.subr.mxu0 %v563
      %599 = vmatpush1.msra.mxu0 %v562
      %600 = vmatprep.subr.mxu0 %v567
      %601 = vmatpush1.msra.mxu0 %v566
      %602 = vmatprep.subr.mxu0 0.0
      %603 = vmatpush1.msra.mxu0 0.0
      %604 = vmatprep.subr.mxu0 0.0
      %605 = vmatpush1.msra.mxu0 0.0
      %606 = vmatprep.subr.mxu0 0.0
      %607 = vmatpush1.msra.mxu0 0.0
      %608 = vmatprep.subr.mxu0 0.0
      %609 = vmatpush1.msra.mxu0 0.0
      %610 = vmatprep.subr.mxu0 0.0
      %611 = vmatpush1.msra.mxu0 0.0
      %612 = vmatprep.subr.mxu0 0.0
      %613 = vmatpush1.msra.mxu0 0.0
      %614 = vmatprep.subr.mxu0 0.0
      %615 = vmatpush1.msra.mxu0 0.0
      %616 = vmatprep.subr.mxu0 0.0
      %617 = vmatpush1.msra.mxu0 0.0
      %618 = vmatprep.subr.mxu0 0.0
      %619 = vmatpush1.msra.mxu0 0.0
      %620 = vmatprep.subr.mxu0 0.0
      %621 = vmatpush1.msra.mxu0 0.0
      %622 = vmatprep.subr.mxu0 0.0
      %623 = vmatpush1.msra.mxu0 0.0
      %624 = vmatprep.subr.mxu0 0.0
      %625 = vmatpush1.msra.mxu0 0.0
      %626 = vmatprep.subr.mxu0 0.0
      %627 = vmatpush1.msra.mxu0 0.0
      %628 = vmatprep.subr.mxu0 0.0
      %629 = vmatpush1.msra.mxu0 0.0
      %630 = vmatprep.subr.mxu0 0.0
      %631 = vmatpush1.msra.mxu0 0.0
      %632 = vmatprep.subr.mxu0 0.0
      %633 = vmatpush1.msra.mxu0 0.0
      %634 = vmatprep.mubr.f32.mxu0 0.0
      %635 = vmatmul.mubr.f32.gmra.mrb[0].mxu0 %v238
      %v636 = vpop.f32.mrb[0].mxu0
      %v637 = vadd.f32 0.0, %v636
      %v638 = vpop.f32.mrb[0].mxu0
      %v639 = vadd.f32 0.0, %v638
      %640 = vdwg.mxu0
      %641 = vmatprep.subr.mxu0 %v509
      %642 = vmatpush1.msra.mxu0 %v508
      %643 = vmatprep.subr.mxu0 %v513
      %644 = vmatpush1.msra.mxu0 %v512
      %645 = vmatprep.subr.mxu0 %v517
      %646 = vmatpush1.msra.mxu0 %v516
      %647 = vmatprep.subr.mxu0 %v521
      %648 = vmatpush1.msra.mxu0 %v520
      %649 = vmatprep.subr.mxu0 %v525
      %650 = vmatpush1.msra.mxu0 %v524
      %651 = vmatprep.subr.mxu0 %v529
      %652 = vmatpush1.msra.mxu0 %v528
      %653 = vmatprep.subr.mxu0 %v533
      %654 = vmatpush1.msra.mxu0 %v532
      %655 = vmatprep.subr.mxu0 %v537
      %656 = vmatpush1.msra.mxu0 %v536
      %657 = vmatprep.subr.mxu0 %v541
      %658 = vmatpush1.msra.mxu0 %v540
      %659 = vmatprep.subr.mxu0 %v545
      %660 = vmatpush1.msra.mxu0 %v544
      %661 = vmatprep.subr.mxu0 %v549
      %662 = vmatpush1.msra.mxu0 %v548
      %663 = vmatprep.subr.mxu0 %v553
      %664 = vmatpush1.msra.mxu0 %v552
      %665 = vmatprep.subr.mxu0 %v557
      %666 = vmatpush1.msra.mxu0 %v556
      %667 = vmatprep.subr.mxu0 %v561
      %668 = vmatpush1.msra.mxu0 %v560
      %669 = vmatprep.subr.mxu0 %v565
      %670 = vmatpush1.msra.mxu0 %v564
      %671 = vmatprep.subr.mxu0 %v569
      %672 = vmatpush1.msra.mxu0 %v568
      %673 = vmatprep.subr.mxu0 0.0
      %674 = vmatpush1.msra.mxu0 0.0
      %675 = vmatprep.subr.mxu0 0.0
      %676 = vmatpush1.msra.mxu0 0.0
      %677 = vmatprep.subr.mxu0 0.0
      %678 = vmatpush1.msra.mxu0 0.0
      %679 = vmatprep.subr.mxu0 0.0
      %680 = vmatpush1.msra.mxu0 0.0
      %681 = vmatprep.subr.mxu0 0.0
      %682 = vmatpush1.msra.mxu0 0.0
      %683 = vmatprep.subr.mxu0 0.0
      %684 = vmatpush1.msra.mxu0 0.0
      %685 = vmatprep.subr.mxu0 0.0
      %686 = vmatpush1.msra.mxu0 0.0
      %687 = vmatprep.subr.mxu0 0.0
      %688 = vmatpush1.msra.mxu0 0.0
      %689 = vmatprep.subr.mxu0 0.0
      %690 = vmatpush1.msra.mxu0 0.0
      %691 = vmatprep.subr.mxu0 0.0
      %692 = vmatpush1.msra.mxu0 0.0
      %693 = vmatprep.subr.mxu0 0.0
      %694 = vmatpush1.msra.mxu0 0.0
      %695 = vmatprep.subr.mxu0 0.0
      %696 = vmatpush1.msra.mxu0 0.0
      %697 = vmatprep.subr.mxu0 0.0
      %698 = vmatpush1.msra.mxu0 0.0
      %699 = vmatprep.subr.mxu0 0.0
      %700 = vmatpush1.msra.mxu0 0.0
      %701 = vmatprep.subr.mxu0 0.0
      %702 = vmatpush1.msra.mxu0 0.0
      %703 = vmatprep.subr.mxu0 0.0
      %704 = vmatpush1.msra.mxu0 0.0
      %705 = vmatprep.mubr.f32.mxu0 0.0
      %706 = vmatmul.mubr.f32.gmra.mrb[0].mxu0 %v238
      %v707 = vpop.f32.mrb[0].mxu0
      %v708 = vadd.f32 0.0, %v707
      %v709 = vpop.f32.mrb[0].mxu0
      %v710 = vadd.f32 0.0, %v709
      %711 = vdwg.mxu0
      %v712 = vadd.f32 %v502, %v637
      %v713 = vadd.f32 %v503, %v639
      %v714 = vadd.f32 %v504, %v708
      %v715 = vadd.f32 %v505, %v710
      %v716 = vxor.u32 %v712, 2147483648
      %v717 = vmul.f32 %v716, 1.442695
      %v718 = vpow.pop %v717
      %v719 = vadd.f32 %v718, 1.0
      %v720 = vrcp.pop %v719
      %v721 = vmul.f32 1.0, %v720
      %v722 = vxor.u32 %v713, 2147483648
      %v723 = vmul.f32 %v722, 1.442695
      %v724 = vpow.pop %v723
      %v725 = vadd.f32 %v724, 1.0
      %v726 = vrcp.pop %v725
      %v727 = vmul.f32 1.0, %v726
      %v728 = vtanh.pop %v714
      %v729 = vxor.u32 %v715, 2147483648
      %v730 = vmul.f32 %v729, 1.442695
      %v731 = vpow.pop %v730
      %v732 = vadd.f32 %v731, 1.0
      %v733 = vrcp.pop %v732
      %v734 = vmul.f32 1.0, %v733
      %v735 = vmul.f32 %v727, %v239
      %v736 = vmul.f32 %v721, %v728
      %v737 = vadd.f32 %v735, %v736
      %v738 = vtanh.pop %v737
      %v739 = vmul.f32 %v734, %v738
      %v740 = vsel %vm497, 1, 0
      %741 = vset.pattern.permute.xlu0 0
      %742 = vperm.xlu0 %741, %v740
      %v743 = vpop.permute.xlu0 %742
      %vm744 = vcmp.eq.s32.totalorder %v743, 1
      %v745 = vsel %vm744, %v739, %v238
      %v746 = vsel %vm744, %v737, %v239
      %v747 = vsel %vm744, %v739, 0.0
      %s748 = smul.u32 %s495, 8
      %s749 = scalar_lea.vmem [#allocation3], %s748
      %750 = vst [vmem:[%s749] sm:$0xff] %v747
    $region104: #{attention_rnn_forward.1} parent=1 // loop_footer
      %s235 = sadd.s32 1, %s231
    $region105: #{attention_rnn_forward.1} parent=1 // loop_footer_branch
      %230 = sbr.rel target = $region101
    $region106: #{attention_rnn_forward.1} parent=1 // loop_exit
      _
    %751 = vst [vmem:[#allocation4] sm:$0xff] %v236
    %752 = vst [vmem:[#allocation5] sm:$0xff] %v237
    %753 = vst [vmem:[#allocation6] sm:$0xff] %v238
    %754 = vst [vmem:[#allocation7] sm:$0xff] %v239
    // Predicated region
    $region107: #{attention_rnn_forward.1} parent=1 // pred_check
      %p755 = pneg %p216
    $region108: #{attention_rnn_forward.1} parent=1 // pred_check_branch
      %757 = sbr.rel (%p755) target = $region110
    $region109: #{attention_rnn_forward.1} parent=1 // pred_region
      %v758 = vld [vmem:[#allocation2] sm:$0xff]
      %v759 = vld [vmem:[#allocation2 + $0x8] sm:$0xff]
      %v760 = vld [vmem:[#allocation2 + $0x10] sm:$0xff]
      %v761 = vld [vmem:[#allocation2 + $0x18] sm:$0xff]
      %v762 = vld [vmem:[#allocation2 + $0x20] sm:$0xff]
      %v763 = vld [vmem:[#allocation2 + $0x28] sm:$0xff]
      %v764 = vld [vmem:[#allocation2 + $0x30] sm:$0xff]
      %v765 = vld [vmem:[#allocation2 + $0x38] sm:$0xff]
      %v766 = vld [vmem:[#allocation3] sm:$0xff]
      %v767 = vld [vmem:[#allocation3 + $0x8] sm:$0xff]
      %v768 = vld [vmem:[#allocation3 + $0x10] sm:$0xff]
      %v769 = vld [vmem:[#allocation3 + $0x18] sm:$0xff]
      %v770 = vld [vmem:[#allocation3 + $0x20] sm:$0xff]
      %v771 = vld [vmem:[#allocation3 + $0x28] sm:$0xff]
      %v772 = vld [vmem:[#allocation3 + $0x30] sm:$0xff]
      %v773 = vld [vmem:[#allocation3 + $0x38] sm:$0xff]
      %v774 = vld [vmem:[%s6] sm:$0x1]
      %v776 = vlaneseq
      %v777 = vshrl.u32 %v776, 7
      %v778 = vsub.s32 0, %v777
      %v779 = vrot.slane %v774, %v778
      %v781 = vmul.f32 %v758, %v779
      %v782 = vmul.f32 %v759, %v779
      %v783 = vmul.f32 %v760, %v779
      %v784 = vmul.f32 %v761, %v779
      %v785 = vmul.f32 %v762, %v779
      %v786 = vmul.f32 %v763, %v779
      %v787 = vmul.f32 %v764, %v779
      %v788 = vmul.f32 %v765, %v779
      %789 = vadd.xlane.f32.xlu0 %v781
      %v790 = vpop.xlane.xlu0 %789
      %791 = vadd.xlane.f32.xlu0 %v782
      %v792 = vpop.xlane.xlu0 %791
      %793 = vadd.xlane.f32.xlu0 %v783
      %v794 = vpop.xlane.xlu0 %793
      %795 = vadd.xlane.f32.xlu0 %v784
      %v796 = vpop.xlane.xlu0 %795
      %797 = vadd.xlane.f32.xlu0 %v785
      %v798 = vpop.xlane.xlu0 %797
      %799 = vadd.xlane.f32.xlu0 %v786
      %v800 = vpop.xlane.xlu0 %799
      %801 = vadd.xlane.f32.xlu0 %v787
      %v802 = vpop.xlane.xlu0 %801
      %803 = vadd.xlane.f32.xlu0 %v788
      %v804 = vpop.xlane.xlu0 %803
      %v805 = vld [vmem:[%s7] sm:$0x1]
      %v807 = vlaneseq
      %v808 = vshrl.u32 %v807, 7
      %v809 = vsub.s32 0, %v808
      %v810 = vrot.slane %v805, %v809
      %v812 = vmul.f32 %v766, %v810
      %v813 = vmul.f32 %v767, %v810
      %v814 = vmul.f32 %v768, %v810
      %v815 = vmul.f32 %v769, %v810
      %v816 = vmul.f32 %v770, %v810
      %v817 = vmul.f32 %v771, %v810
      %v818 = vmul.f32 %v772, %v810
      %v819 = vmul.f32 %v773, %v810
      %820 = vadd.xlane.f32.xlu0 %v812
      %v821 = vpop.xlane.xlu0 %820
      %822 = vadd.xlane.f32.xlu0 %v813
      %v823 = vpop.xlane.xlu0 %822
      %824 = vadd.xlane.f32.xlu0 %v814
      %v825 = vpop.xlane.xlu0 %824
      %826 = vadd.xlane.f32.xlu0 %v815
      %v827 = vpop.xlane.xlu0 %826
      %828 = vadd.xlane.f32.xlu0 %v816
      %v829 = vpop.xlane.xlu0 %828
      %830 = vadd.xlane.f32.xlu0 %v817
      %v831 = vpop.xlane.xlu0 %830
      %832 = vadd.xlane.f32.xlu0 %v818
      %v833 = vpop.xlane.xlu0 %832
      %834 = vadd.xlane.f32.xlu0 %v819
      %v835 = vpop.xlane.xlu0 %834
      %v836 = vadd.f32 %v790, %v821
      %v837 = vadd.f32 %v792, %v823
      %v838 = vadd.f32 %v794, %v825
      %v839 = vadd.f32 %v796, %v827
      %v840 = vadd.f32 %v798, %v829
      %v841 = vadd.f32 %v800, %v831
      %v842 = vadd.f32 %v802, %v833
      %v843 = vadd.f32 %v804, %v835
      %v844 = vld [vmem:[#allocation8] sm:$0x1]
      %v846 = vlaneseq
      %v847 = vshrl.u32 %v846, 7
      %v848 = vsub.s32 0, %v847
      %v849 = vrot.slane %v844, %v848
      %850 = vset.pattern.permute.xlu0 0
      %851 = vperm.xlu0 %850, %v849
      %v852 = vpop.permute.xlu0 %851
      %v854 = vadd.f32 %v836, %v852
      %v855 = vadd.f32 %v837, %v852
      %v856 = vadd.f32 %v838, %v852
      %v857 = vadd.f32 %v839, %v852
      %v858 = vadd.f32 %v840, %v852
      %v859 = vadd.f32 %v841, %v852
      %v860 = vadd.f32 %v842, %v852
      %v861 = vadd.f32 %v843, %v852
      %v862 = vld [vmem:[%s3] sm:$0x1]
      %v863 = vlaneseq
      %v864 = vshrl.u32 %v863, 7
      %v865 = vlaneseq
      %v866 = vshrl.u32 %v865, 7
      %v867 = vsub.s32 0, %v866
      %v868 = vrot.slane %v862, %v867
      %vm869 = vcmp.lt.s32.totalorder %v864, %v868
      %v878 = vlaneseq
      %v879 = vand.u32 %v878, 127
      %v880 = vlaneseq
      %v881 = vshrl.u32 %v880, 7
      %v882 = vsub.s32 %v879, %v881
      %v883 = vrot.slane %v854, %v882
      %v884 = vlaneseq
      %v885 = vshrl.u32 %v884, 7
      %v886 = vsub.s32 %v879, %v885
      %v887 = vrot.slane %v855, %v886
      %v888 = vlaneseq
      %v889 = vshrl.u32 %v888, 7
      %v890 = vsub.s32 %v879, %v889
      %v891 = vrot.slane %v856, %v890
      %v892 = vlaneseq
      %v893 = vshrl.u32 %v892, 7
      %v894 = vsub.s32 %v879, %v893
      %v895 = vrot.slane %v857, %v894
      %v896 = vlaneseq
      %v897 = vshrl.u32 %v896, 7
      %v898 = vsub.s32 %v879, %v897
      %v899 = vrot.slane %v858, %v898
      %v900 = vlaneseq
      %v901 = vshrl.u32 %v900, 7
      %v902 = vsub.s32 %v879, %v901
      %v903 = vrot.slane %v859, %v902
      %v904 = vlaneseq
      %v905 = vshrl.u32 %v904, 7
      %v906 = vsub.s32 %v879, %v905
      %v907 = vrot.slane %v860, %v906
      %v908 = vlaneseq
      %v909 = vshrl.u32 %v908, 7
      %v910 = vsub.s32 %v879, %v909
      %v911 = vrot.slane %v861, %v910
      %vm912 = vcmask 1041409
      %v913 = vsel %vm912, %v887, %v883
      %vm914 = vcmask 1042434
      %v915 = vsel %vm914, %v891, %v913
      %vm916 = vcmask 1043459
      %v917 = vsel %vm916, %v895, %v915
      %vm918 = vcmask 1044484
      %v919 = vsel %vm918, %v899, %v917
      %vm920 = vcmask 1045509
      %v921 = vsel %vm920, %v903, %v919
      %vm922 = vcmask 1046534
      %v923 = vsel %vm922, %v907, %v921
      %vm924 = vcmask 1047559
      %v925 = vsel %vm924, %v911, %v923
      %v927 = vsel %vm869, %v925, -1e+09
      %vm928 = vcmask 64512
      %v929 = vsel %vm928, %v927, -inf
      %v930 = vrot.slane %v929, 4
      %v931 = vmax.f32 %v929, %v930
      %v932 = vrot.slane %v931, 2
      %v933 = vmax.f32 %v931, %v932
      %v934 = vrot.slane %v933, 1
      %v935 = vmax.f32 %v933, %v934
      %v936 = vsub.f32 %v927, %v935
      %v937 = vmul.f32 %v936, 1.442695
      %v938 = vpow.pop %v937
      %v939 = vsel %vm928, %v938, 0.0
      %v940 = vrot.slane %v939, 4
      %v941 = vadd.f32 %v939, %v940
      %v942 = vrot.slane %v941, 2
      %v943 = vadd.f32 %v941, %v942
      %v944 = vrot.slane %v943, 1
      %v945 = vadd.f32 %v943, %v944
      %v946 = vmax.f32 %v945, 1e-30
      %v947 = vrcp.pop %v946
      %v948 = vmul.f32 %v938, %v947
      %v949 = vlaneseq
      %v950 = vshrl.u32 %v949, 7
      %v951 = vsub.s32 0, %v950
      %v952 = vrot.slane %v948, %v951
      %954 = vbcast.lane.b32.xlu0 %v952, 256
      %v955 = vpop.permute.xlu0 %954
      %v956 = vlaneseq
      %v957 = vshrl.u32 %v956, 7
      %v958 = vsub.s32 1, %v957
      %v959 = vrot.slane %v948, %v958
      %961 = vbcast.lane.b32.xlu0 %v959, 256
      %v962 = vpop.permute.xlu0 %961
      %v963 = vlaneseq
      %v964 = vshrl.u32 %v963, 7
      %v965 = vsub.s32 2, %v964
      %v966 = vrot.slane %v948, %v965
      %968 = vbcast.lane.b32.xlu0 %v966, 256
      %v969 = vpop.permute.xlu0 %968
      %v970 = vlaneseq
      %v971 = vshrl.u32 %v970, 7
      %v972 = vsub.s32 3, %v971
      %v973 = vrot.slane %v948, %v972
      %975 = vbcast.lane.b32.xlu0 %v973, 256
      %v976 = vpop.permute.xlu0 %975
      %v977 = vlaneseq
      %v978 = vshrl.u32 %v977, 7
      %v979 = vsub.s32 4, %v978
      %v980 = vrot.slane %v948, %v979
      %982 = vbcast.lane.b32.xlu0 %v980, 256
      %v983 = vpop.permute.xlu0 %982
      %v984 = vlaneseq
      %v985 = vshrl.u32 %v984, 7
      %v986 = vsub.s32 5, %v985
      %v987 = vrot.slane %v948, %v986
      %989 = vbcast.lane.b32.xlu0 %v987, 256
      %v990 = vpop.permute.xlu0 %989
      %v991 = vlaneseq
      %v992 = vshrl.u32 %v991, 7
      %v993 = vsub.s32 6, %v992
      %v994 = vrot.slane %v948, %v993
      %996 = vbcast.lane.b32.xlu0 %v994, 256
      %v997 = vpop.permute.xlu0 %996
      %v998 = vlaneseq
      %v999 = vshrl.u32 %v998, 7
      %v1000 = vsub.s32 7, %v999
      %v1001 = vrot.slane %v948, %v1000
      %1003 = vbcast.lane.b32.xlu0 %v1001, 256
      %v1004 = vpop.permute.xlu0 %1003
      %v1005 = vmul.f32 %v758, %v955
      %v1006 = vmul.f32 %v759, %v962
      %v1007 = vmul.f32 %v760, %v969
      %v1008 = vmul.f32 %v761, %v976
      %v1009 = vmul.f32 %v762, %v983
      %v1010 = vmul.f32 %v763, %v990
      %v1011 = vmul.f32 %v764, %v997
      %v1012 = vmul.f32 %v765, %v1004
      %v1013 = vadd.f32 %v1005, %v1006
      %v1014 = vadd.f32 %v1013, %v1007
      %v1015 = vadd.f32 %v1014, %v1008
      %v1016 = vadd.f32 %v1015, %v1009
      %v1017 = vadd.f32 %v1016, %v1010
      %v1018 = vadd.f32 %v1017, %v1011
      %v1019 = vadd.f32 %v1018, %v1012
      %v1020 = vmul.f32 %v766, %v955
      %v1021 = vmul.f32 %v767, %v962
      %v1022 = vmul.f32 %v768, %v969
      %v1023 = vmul.f32 %v769, %v976
      %v1024 = vmul.f32 %v770, %v983
      %v1025 = vmul.f32 %v771, %v990
      %v1026 = vmul.f32 %v772, %v997
      %v1027 = vmul.f32 %v773, %v1004
      %v1028 = vadd.f32 %v1020, %v1021
      %v1029 = vadd.f32 %v1028, %v1022
      %v1030 = vadd.f32 %v1029, %v1023
      %v1031 = vadd.f32 %v1030, %v1024
      %v1032 = vadd.f32 %v1031, %v1025
      %v1033 = vadd.f32 %v1032, %v1026
      %v1034 = vadd.f32 %v1033, %v1027
      %v1035 = vld [vmem:[%s9] sm:$0xff]
      %v1036 = vld [vmem:[%s9 + $0x8] sm:$0xff]
      %v1037 = vld [vmem:[%s9 + $0x10] sm:$0xff]
      %v1038 = vld [vmem:[%s9 + $0x18] sm:$0xff]
      %v1039 = vld [vmem:[%s9 + $0x20] sm:$0xff]
      %v1040 = vld [vmem:[%s9 + $0x28] sm:$0xff]
      %v1041 = vld [vmem:[%s9 + $0x30] sm:$0xff]
      %v1042 = vld [vmem:[%s9 + $0x38] sm:$0xff]
      %v1043 = vld [vmem:[%s9 + $0x40] sm:$0xff]
      %v1044 = vld [vmem:[%s9 + $0x48] sm:$0xff]
      %v1045 = vld [vmem:[%s9 + $0x50] sm:$0xff]
      %v1046 = vld [vmem:[%s9 + $0x58] sm:$0xff]
      %v1047 = vld [vmem:[%s9 + $0x60] sm:$0xff]
      %v1048 = vld [vmem:[%s9 + $0x68] sm:$0xff]
      %v1049 = vld [vmem:[%s9 + $0x70] sm:$0xff]
      %v1050 = vld [vmem:[%s9 + $0x78] sm:$0xff]
      %v1051 = vld [vmem:[%s10] sm:$0xff]
      %v1052 = vld [vmem:[%s10 + $0x8] sm:$0xff]
      %v1053 = vld [vmem:[%s10 + $0x10] sm:$0xff]
      %v1054 = vld [vmem:[%s10 + $0x18] sm:$0xff]
      %v1055 = vld [vmem:[%s10 + $0x20] sm:$0xff]
      %v1056 = vld [vmem:[%s10 + $0x28] sm:$0xff]
      %v1057 = vld [vmem:[%s10 + $0x30] sm:$0xff]
      %v1058 = vld [vmem:[%s10 + $0x38] sm:$0xff]
      %v1059 = vld [vmem:[%s10 + $0x40] sm:$0xff]
      %v1060 = vld [vmem:[%s10 + $0x48] sm:$0xff]
      %v1061 = vld [vmem:[%s10 + $0x50] sm:$0xff]
      %v1062 = vld [vmem:[%s10 + $0x58] sm:$0xff]
      %v1063 = vld [vmem:[%s10 + $0x60] sm:$0xff]
      %v1064 = vld [vmem:[%s10 + $0x68] sm:$0xff]
      %v1065 = vld [vmem:[%s10 + $0x70] sm:$0xff]
      %v1066 = vld [vmem:[%s10 + $0x78] sm:$0xff]
      %1067 = vmatprep.subr.mxu0 0.0
      %1068 = vmatpush1.msra.mxu0 %v1051
      %1069 = vmatprep.subr.mxu0 0.0
      %1070 = vmatpush1.msra.mxu0 %v1052
      %1071 = vmatprep.subr.mxu0 0.0
      %1072 = vmatpush1.msra.mxu0 %v1053
      %1073 = vmatprep.subr.mxu0 0.0
      %1074 = vmatpush1.msra.mxu0 %v1054
      %1075 = vmatprep.subr.mxu0 0.0
      %1076 = vmatpush1.msra.mxu0 %v1055
      %1077 = vmatprep.subr.mxu0 0.0
      %1078 = vmatpush1.msra.mxu0 %v1056
      %1079 = vmatprep.subr.mxu0 0.0
      %1080 = vmatpush1.msra.mxu0 %v1057
      %1081 = vmatprep.subr.mxu0 0.0
      %1082 = vmatpush1.msra.mxu0 %v1058
      %1083 = vmatprep.subr.mxu0 0.0
      %1084 = vmatpush1.msra.mxu0 %v1059
      %1085 = vmatprep.subr.mxu0 0.0
      %1086 = vmatpush1.msra.mxu0 %v1060
      %1087 = vmatprep.subr.mxu0 0.0
      %1088 = vmatpush1.msra.mxu0 %v1061
      %1089 = vmatprep.subr.mxu0 0.0
      %1090 = vmatpush1.msra.mxu0 %v1062
      %1091 = vmatprep.subr.mxu0 0.0
      %1092 = vmatpush1.msra.mxu0 %v1063
      %1093 = vmatprep.subr.mxu0 0.0
      %1094 = vmatpush1.msra.mxu0 %v1064
      %1095 = vmatprep.subr.mxu0 0.0
      %1096 = vmatpush1.msra.mxu0 %v1065
      %1097 = vmatprep.subr.mxu0 0.0
      %1098 = vmatpush1.msra.mxu0 %v1066
      %1099 = vmatprep.subr.mxu0 0.0
      %1100 = vmatpush1.msra.mxu0 0.0
      %1101 = vmatprep.subr.mxu0 0.0
      %1102 = vmatpush1.msra.mxu0 0.0
      %1103 = vmatprep.subr.mxu0 0.0
      %1104 = vmatpush1.msra.mxu0 0.0
      %1105 = vmatprep.subr.mxu0 0.0
      %1106 = vmatpush1.msra.mxu0 0.0
      %1107 = vmatprep.subr.mxu0 0.0
      %1108 = vmatpush1.msra.mxu0 0.0
      %1109 = vmatprep.subr.mxu0 0.0
      %1110 = vmatpush1.msra.mxu0 0.0
      %1111 = vmatprep.subr.mxu0 0.0
      %1112 = vmatpush1.msra.mxu0 0.0
      %1113 = vmatprep.subr.mxu0 0.0
      %1114 = vmatpush1.msra.mxu0 0.0
      %1115 = vmatprep.subr.mxu0 0.0
      %1116 = vmatpush1.msra.mxu0 0.0
      %1117 = vmatprep.subr.mxu0 0.0
      %1118 = vmatpush1.msra.mxu0 0.0
      %1119 = vmatprep.subr.mxu0 0.0
      %1120 = vmatpush1.msra.mxu0 0.0
      %1121 = vmatprep.subr.mxu0 0.0
      %1122 = vmatpush1.msra.mxu0 0.0
      %1123 = vmatprep.subr.mxu0 0.0
      %1124 = vmatpush1.msra.mxu0 0.0
      %1125 = vmatprep.subr.mxu0 0.0
      %1126 = vmatpush1.msra.mxu0 0.0
      %1127 = vmatprep.subr.mxu0 0.0
      %1128 = vmatpush1.msra.mxu0 0.0
      %1129 = vmatprep.subr.mxu0 0.0
      %1130 = vmatpush1.msra.mxu0 0.0
      %1131 = vmatprep.mubr.f32.mxu0 0.0
      %1132 = vmatmul.mubr.f32.gmra.mrb[0].mxu0 %v1034
      %v1133 = vpop.f32.mrb[0].mxu0
      %v1134 = vadd.f32 0.0, %v1133
      %v1135 = vpop.f32.mrb[0].mxu0
      %1136 = vdwg.mxu0
      %1137 = vmatprep.subr.mxu0 0.0
      %1138 = vmatpush1.msra.mxu0 %v1035
      %1139 = vmatprep.subr.mxu0 0.0
      %1140 = vmatpush1.msra.mxu0 %v1036
      %1141 = vmatprep.subr.mxu0 0.0
      %1142 = vmatpush1.msra.mxu0 %v1037
      %1143 = vmatprep.subr.mxu0 0.0
      %1144 = vmatpush1.msra.mxu0 %v1038
      %1145 = vmatprep.subr.mxu0 0.0
      %1146 = vmatpush1.msra.mxu0 %v1039
      %1147 = vmatprep.subr.mxu0 0.0
      %1148 = vmatpush1.msra.mxu0 %v1040
      %1149 = vmatprep.subr.mxu0 0.0
      %1150 = vmatpush1.msra.mxu0 %v1041
      %1151 = vmatprep.subr.mxu0 0.0
      %1152 = vmatpush1.msra.mxu0 %v1042
      %1153 = vmatprep.subr.mxu0 0.0
      %1154 = vmatpush1.msra.mxu0 %v1043
      %1155 = vmatprep.subr.mxu0 0.0
      %1156 = vmatpush1.msra.mxu0 %v1044
      %1157 = vmatprep.subr.mxu0 0.0
      %1158 = vmatpush1.msra.mxu0 %v1045
      %1159 = vmatprep.subr.mxu0 0.0
      %1160 = vmatpush1.msra.mxu0 %v1046
      %1161 = vmatprep.subr.mxu0 0.0
      %1162 = vmatpush1.msra.mxu0 %v1047
      %1163 = vmatprep.subr.mxu0 0.0
      %1164 = vmatpush1.msra.mxu0 %v1048
      %1165 = vmatprep.subr.mxu0 0.0
      %1166 = vmatpush1.msra.mxu0 %v1049
      %1167 = vmatprep.subr.mxu0 0.0
      %1168 = vmatpush1.msra.mxu0 %v1050
      %1169 = vmatprep.subr.mxu0 0.0
      %1170 = vmatpush1.msra.mxu0 0.0
      %1171 = vmatprep.subr.mxu0 0.0
      %1172 = vmatpush1.msra.mxu0 0.0
      %1173 = vmatprep.subr.mxu0 0.0
      %1174 = vmatpush1.msra.mxu0 0.0
      %1175 = vmatprep.subr.mxu0 0.0
      %1176 = vmatpush1.msra.mxu0 0.0
      %1177 = vmatprep.subr.mxu0 0.0
      %1178 = vmatpush1.msra.mxu0 0.0
      %1179 = vmatprep.subr.mxu0 0.0
      %1180 = vmatpush1.msra.mxu0 0.0
      %1181 = vmatprep.subr.mxu0 0.0
      %1182 = vmatpush1.msra.mxu0 0.0
      %1183 = vmatprep.subr.mxu0 0.0
      %1184 = vmatpush1.msra.mxu0 0.0
      %1185 = vmatprep.subr.mxu0 0.0
      %1186 = vmatpush1.msra.mxu0 0.0
      %1187 = vmatprep.subr.mxu0 0.0
      %1188 = vmatpush1.msra.mxu0 0.0
      %1189 = vmatprep.subr.mxu0 0.0
      %1190 = vmatpush1.msra.mxu0 0.0
      %1191 = vmatprep.subr.mxu0 0.0
      %1192 = vmatpush1.msra.mxu0 0.0
      %1193 = vmatprep.subr.mxu0 0.0
      %1194 = vmatpush1.msra.mxu0 0.0
      %1195 = vmatprep.subr.mxu0 0.0
      %1196 = vmatpush1.msra.mxu0 0.0
      %1197 = vmatprep.subr.mxu0 0.0
      %1198 = vmatpush1.msra.mxu0 0.0
      %1199 = vmatprep.subr.mxu0 0.0
      %1200 = vmatpush1.msra.mxu0 0.0
      %1201 = vmatprep.mubr.f32.mxu0 0.0
      %1202 = vmatmul.mubr.f32.gmra.mrb[0].mxu0 %v1019
      %v1203 = vpop.f32.mrb[0].mxu0
      %v1204 = vadd.f32 %v1134, %v1203
      %v1205 = vpop.f32.mrb[0].mxu0
      %1206 = vdwg.mxu0
      %v1207 = vld [vmem:[%s11] sm:$0x1]
      %v1209 = vlaneseq
      %v1210 = vshrl.u32 %v1209, 7
      %v1211 = vsub.s32 0, %v1210
      %v1212 = vrot.slane %v1207, %v1211
      %v1214 = vadd.f32 %v1204, %v1212
      %1215 = vst.msk [vmem:[%s13] sm:$0xff] %vm928, %v948
      %1216 = vst [vmem:[%s12] sm:$0xff] %v1214
    $region110: #{attention_rnn_forward.1} parent=1 // pred_fallthru
      _
    // Predicated region
    $region111: #{attention_rnn_forward.1} parent=1 // pred_check
      _
    $region112: #{attention_rnn_forward.1} parent=1 // pred_check_branch
      %1218 = sbr.rel (0) target = $region114
    $region113: #{attention_rnn_forward.1} parent=1 // pred_region
      _
    $region114: #{attention_rnn_forward.1} parent=1 // pred_fallthru
      _
    // Predicated region
    $region115: #{attention_rnn_forward.1} parent=1 // pred_check
      _
    $region116: #{attention_rnn_forward.1} parent=1 // pred_check_branch
      %1220 = sbr.rel (0) target = $region118
    $region117: #{attention_rnn_forward.1} parent=1 // pred_region
      _
    $region118: #{attention_rnn_forward.1} parent=1 // pred_fallthru
      _
    // Predicated region
    $region119: #{attention_rnn_forward.1} parent=1 // pred_check
      _
    $region120: #{attention_rnn_forward.1} parent=1 // pred_check_branch
      %1222 = sbr.rel (0) target = $region122
    $region121: #{attention_rnn_forward.1} parent=1 // pred_region
      _
    $region122: #{attention_rnn_forward.1} parent=1 // pred_fallthru
      _
    // Predicated region
    $region123: #{attention_rnn_forward.1} parent=1 // pred_check
      _
    $region124: #{attention_rnn_forward.1} parent=1 // pred_check_branch
      %1224 = sbr.rel (0) target = $region126
    $region125: #{attention_rnn_forward.1} parent=1 // pred_region
      _
    $region126: #{attention_rnn_forward.1} parent=1 // pred_fallthru
      _

</llo_original>
